<compile_context>
chip_gen: v7x
topology: tpu7x:2x2x1
jax: 0.10.0
libtpu: 0.0.40
codegen_flags: <defaults>
</compile_context>

<pallas_src>
import functools

import jax
import jax.numpy as jnp
import numpy as np
from jax.experimental import pallas as pl
from jax.experimental.pallas import tpu as pltpu


def _crossconv_kernel(x_top_ref, x_cur_ref, x_bot_ref,
                      w1_ref, b1_ref, w2_ref, b2_ref, o_ref, *, add):
    # x_cur_ref: (1, TH, W, C1)  current H-tile of the input
    # x_top_ref: (1, 1,  W, C1)  row above the tile (clamped at the image edge)
    # x_bot_ref: (1, 1,  W, C1)  row below the tile (clamped at the image edge)
    # w1_ref:    (3*C1, Cm)      cv1 taps stacked along Cin, BN scale pre-folded
    # w2_ref:    (3*Cm, C2)      cv2 taps stacked along Cin, BN scale pre-folded
    # b*_ref:    (1, C)          folded BN bias
    # o_ref:     (1, TH, W, C2)
    TH = x_cur_ref.shape[1]
    W = x_cur_ref.shape[2]
    C1 = x_cur_ref.shape[3]
    Cm = w1_ref.shape[1]
    C2 = w2_ref.shape[1]
    Hx = TH + 2

    t = pl.program_id(1)
    nt = pl.num_programs(1)

    # H-halo'd input tile: rows [t*TH-1, t*TH+TH] (edge rows are clamped copies;
    # the corresponding bogus y1 rows are zeroed below, which reproduces the
    # zero H-padding of the (3,1) conv).
    x_ext = jnp.concatenate(
        [x_top_ref[0], x_cur_ref[0], x_bot_ref[0]], axis=0)       # (Hx, W, C1)

    # ---- cv1: (1,3) conv along W, all 3 taps fused into ONE matmul ----------
    # W boundary handled in-register (replaces the host-side padded HBM copy).
    zcol = jnp.zeros((Hx, 1, C1), x_ext.dtype)
    x_l = jnp.concatenate([zcol, x_ext[:, :W - 1, :]], axis=1)    # x[h, w-1]
    x_r = jnp.concatenate([x_ext[:, 1:, :], zcol], axis=1)        # x[h, w+1]
    xcat = jnp.concatenate([x_l, x_ext, x_r], axis=-1)            # (Hx, W, 3*C1)

    acc1 = jnp.dot(xcat.reshape(Hx * W, 3 * C1), w1_ref[...],
                   preferred_element_type=jnp.float32)
    # BN scale already folded into w1; only bias + ReLU here.
    y1 = jnp.maximum(acc1 + b1_ref[...], 0.0).reshape(Hx, W, Cm)

    # Zero the halo rows that fall outside the image (zero H-padding for cv2).
    r = jax.lax.broadcasted_iota(jnp.int32, (Hx, 1, 1), 0)
    keep = jnp.logical_and(jnp.logical_or(r != 0, t > 0),
                           jnp.logical_or(r != Hx - 1, t < nt - 1))
    y1 = jnp.where(keep, y1, 0.0)

    # ---- cv2: (3,1) conv along H, all 3 taps fused into ONE matmul ----------
    ycat = jnp.concatenate([y1[0:TH],          # y1[h-1]
                            y1[1:TH + 1],      # y1[h]
                            y1[2:TH + 2]],     # y1[h+1]
                           axis=-1)                                # (TH, W, 3*Cm)
    acc2 = jnp.dot(ycat.reshape(TH * W, 3 * Cm), w2_ref[...],
                   preferred_element_type=jnp.float32)
    y2 = jnp.maximum(acc2 + b2_ref[...], 0.0)

    if add:   # residual shortcut (only when c1 == c2)
        y2 = y2 + x_cur_ref[0].reshape(TH * W, C1).astype(jnp.float32)

    o_ref[0] = y2.reshape(TH, W, C2).astype(o_ref.dtype)


def _pick_tile_h(H, W, C, budget_bytes=2 << 20):
    """Largest divisor of H whose (TH, W, C) f32 slab fits the per-block budget."""
    best = 1
    for th in range(1, H + 1):
        if H % th == 0 and th * W * C * 4 <= budget_bytes:
            best = th
    return best


def crossconv_pallas(x_nchw, w1, bn1, w2, bn2, *, shortcut, tile_h=None):
    """x_nchw: (B, C1, H, W); w1: (C_, C1, 1, 3); w2: (C2, C_, 3, 1);
    bn = (gamma, beta, running_mean, running_var, eps)."""
    B, C1, H, W = x_nchw.shape
    C_ = w1.shape[0]
    C2 = w2.shape[0]
    add = bool(shortcut) and (C1 == C2)

    # Fold BatchNorm (inference mode) into per-output-channel scale & bias,
    # then fold the *scale* straight into the conv weights (free, host-side).
    g1, be1, m1, v1, eps1 = bn1
    s1 = g1 / jnp.sqrt(v1 + eps1)
    b1 = be1 - m1 * s1
    g2, be2, m2, v2, eps2 = bn2
    s2 = g2 / jnp.sqrt(v2 + eps2)
    b2 = be2 - m2 * s2

    # PyTorch OIHW -> (tap, Cin, Cout); scale folded over Cout; taps stacked
    # along Cin so each conv becomes a single (3*Cin, Cout) matmul.
    w1_s = (jnp.transpose(w1[:, :, 0, :], (2, 1, 0))
            * s1[None, None, :]).reshape(3 * C1, C_)
    w2_s = (jnp.transpose(w2[:, :, :, 0], (2, 1, 0))
            * s2[None, None, :]).reshape(3 * C_, C2)

    x_nhwc = jnp.transpose(x_nchw, (0, 2, 3, 1))      # NCHW -> NHWC (no padding copy)

    if tile_h is None:
        tile_h = _pick_tile_h(H, W, max(C1, C_, C2))
    if H % tile_h != 0:
        tile_h = max(d for d in range(1, tile_h + 1) if H % d == 0)
    TH = tile_h
    n_th = H // TH

    cur_map = lambda b, t: (b, t, 0, 0)
    top_map = lambda b, t: (b, jnp.maximum(t * TH - 1, 0), 0, 0)      # row above tile
    bot_map = lambda b, t: (b, jnp.minimum(t * TH + TH, H - 1), 0, 0)  # row below tile
    full2d = lambda b, t: (0, 0)

    kernel = functools.partial(_crossconv_kernel, add=add)
    out_nhwc = pl.pallas_call(
        kernel,
        out_shape=jax.ShapeDtypeStruct((B, H, W, C2), x_nchw.dtype),
        grid_spec=pltpu.PrefetchScalarGridSpec(
            num_scalar_prefetch=0,
            grid=(B, n_th),
            in_specs=[
                pl.BlockSpec((1, 1, W, C1), top_map),
                pl.BlockSpec((1, TH, W, C1), cur_map),
                pl.BlockSpec((1, 1, W, C1), bot_map),
                pl.BlockSpec((3 * C1, C_), full2d),
                pl.BlockSpec((1, C_), full2d),
                pl.BlockSpec((3 * C_, C2), full2d),
                pl.BlockSpec((1, C2), full2d),
            ],
            out_specs=pl.BlockSpec((1, TH, W, C2), cur_map),
        ),
        compiler_params=pltpu.CompilerParams(
            dimension_semantics=("parallel", "parallel")),
    )(x_nhwc, x_nhwc, x_nhwc,
      w1_s, b1.reshape(1, C_), w2_s, b2.reshape(1, C2))

    return jnp.transpose(out_nhwc, (0, 3, 1, 2))      # NHWC -> NCHW


def crossconv_ref(x, w1, bn1, w2, bn2, *, shortcut):
    """Pure-JAX reference (NCHW, mirrors the PyTorch module in eval mode)."""
    g1, be1, m1, v1, eps1 = bn1
    s1 = g1 / jnp.sqrt(v1 + eps1)
    b1 = be1 - m1 * s1
    g2, be2, m2, v2, eps2 = bn2
    s2 = g2 / jnp.sqrt(v2 + eps2)
    b2 = be2 - m2 * s2

    y = jax.lax.conv_general_dilated(
        x, w1, (1, 1), ((0, 0), (1, 1)),
        dimension_numbers=("NCHW", "OIHW", "NCHW"),
        precision=jax.lax.Precision.HIGHEST)
    y = jnp.maximum(y * s1[None, :, None, None] + b1[None, :, None, None], 0.0)
    y = jax.lax.conv_general_dilated(
        y, w2, (1, 1), ((1, 1), (0, 0)),
        dimension_numbers=("NCHW", "OIHW", "NCHW"),
        precision=jax.lax.Precision.HIGHEST)
    y = jnp.maximum(y * s2[None, :, None, None] + b2[None, :, None, None], 0.0)
    add = shortcut and x.shape[1] == y.shape[1]
    return x + y if add else y


if __name__ == "__main__":
    # CrossConv(c1=8, c2=8, k=3, s=1, g=1, e=1.0, shortcut=True)
    B, C1, C2, H, W = 2, 8, 8, 16, 16
    K = 3
    E = 1.0
    C_ = int(C2 * E)
    shortcut = True   # c1 == c2 -> exercise the residual-add branch

    key = jax.random.PRNGKey(0)
    keys = jax.random.split(key, 12)
    x = jax.random.normal(keys[0], (B, C1, H, W), jnp.float32)

    # deterministic synthetic parameters (shapes match the PyTorch module)
    w1 = 0.1 * jax.random.normal(keys[1], (C_, C1, 1, K), jnp.float32)
    bn1 = (jax.random.uniform(keys[2], (C_,), jnp.float32, 0.5, 1.5),   # gamma
           0.1 * jax.random.normal(keys[3], (C_,), jnp.float32),        # beta
           0.1 * jax.random.normal(keys[4], (C_,), jnp.float32),        # running_mean
           jax.random.uniform(keys[5], (C_,), jnp.float32, 0.5, 1.5),   # running_var
           1e-5)
    w2 = 0.1 * jax.random.normal(keys[6], (C2, C_, K, 1), jnp.float32)
    bn2 = (jax.random.uniform(keys[7], (C2,), jnp.float32, 0.5, 1.5),
           0.1 * jax.random.normal(keys[8], (C2,), jnp.float32),
           0.1 * jax.random.normal(keys[9], (C2,), jnp.float32),
           jax.random.uniform(keys[10], (C2,), jnp.float32, 0.5, 1.5),
           1e-5)

    ref = crossconv_ref(x, w1, bn1, w2, bn2, shortcut=shortcut)

    # multi-tile path (exercises interior halos + boundary masking)
    out_tiled = crossconv_pallas(x, w1, bn1, w2, bn2, shortcut=shortcut, tile_h=8)
    out_tiled = jax.block_until_ready(out_tiled)
    np.testing.assert_allclose(np.asarray(out_tiled), np.asarray(ref),
                               rtol=1e-3, atol=1e-3)

    # auto-chosen tile (single tile at this size: both halos masked in one step)
    out_auto = crossconv_pallas(x, w1, bn1, w2, bn2, shortcut=shortcut)
    out_auto = jax.block_until_ready(out_auto)
    np.testing.assert_allclose(np.asarray(out_auto), np.asarray(ref),
                               rtol=1e-3, atol=1e-3)

    print("KERNEL_OK")
</pallas_src>

<mosaic_0001>
module attributes {stable_mosaic.version = 11 : i64} {
  func.func @_crossconv_kernel(%arg0: i32, %arg1: i32, %arg2: memref<1x1x16x8xf32, #tpu.memory_space<vmem>>, %arg3: memref<1x8x16x8xf32, #tpu.memory_space<vmem>>, %arg4: memref<1x1x16x8xf32, #tpu.memory_space<vmem>>, %arg5: memref<24x8xf32, #tpu.memory_space<vmem>>, %arg6: memref<1x8xf32, #tpu.memory_space<vmem>>, %arg7: memref<24x8xf32, #tpu.memory_space<vmem>>, %arg8: memref<1x8xf32, #tpu.memory_space<vmem>>, %arg9: memref<1x8x16x8xf32, #tpu.memory_space<vmem>>) attributes {dimension_semantics = [#tpu.dimension_semantics<parallel>, #tpu.dimension_semantics<parallel>], iteration_bounds = array<i64: 2, 2>, scalar_prefetch = 0 : i64, scratch_operands = 0 : i64, tpu.core_type = #tpu.core_type<tc>, window_params = [{transform_indices = @transform_0, window_bounds = array<i64: 1, 1, 16, 8>}, {transform_indices = @transform_1, window_bounds = array<i64: 1, 8, 16, 8>}, {transform_indices = @transform_2, window_bounds = array<i64: 1, 1, 16, 8>}, {pipeline_mode = #tpu.pipeline_mode<synchronous>, transform_indices = @transform_3, window_bounds = array<i64: 24, 8>}, {pipeline_mode = #tpu.pipeline_mode<synchronous>, transform_indices = @transform_4, window_bounds = array<i64: 1, 8>}, {pipeline_mode = #tpu.pipeline_mode<synchronous>, transform_indices = @transform_5, window_bounds = array<i64: 24, 8>}, {pipeline_mode = #tpu.pipeline_mode<synchronous>, transform_indices = @transform_6, window_bounds = array<i64: 1, 8>}, {transform_indices = @transform_7, window_bounds = array<i64: 1, 8, 16, 8>}]} {
    %c0 = arith.constant 0 : index
    %c0_0 = arith.constant 0 : index
    %c0_1 = arith.constant 0 : index
    %c0_2 = arith.constant 0 : index
    %0 = vector.load %arg2[%c0, %c0_0, %c0_1, %c0_2] : memref<1x1x16x8xf32, #tpu.memory_space<vmem>>, vector<1x1x16x8xf32>
    %1 = vector.shape_cast %0 : vector<1x1x16x8xf32> to vector<1x16x8xf32>
    %c0_3 = arith.constant 0 : index
    %c0_4 = arith.constant 0 : index
    %c0_5 = arith.constant 0 : index
    %c0_6 = arith.constant 0 : index
    %2 = vector.load %arg3[%c0_3, %c0_4, %c0_5, %c0_6] : memref<1x8x16x8xf32, #tpu.memory_space<vmem>>, vector<1x8x16x8xf32>
    %3 = vector.shape_cast %2 : vector<1x8x16x8xf32> to vector<8x16x8xf32>
    %c0_7 = arith.constant 0 : index
    %c0_8 = arith.constant 0 : index
    %c0_9 = arith.constant 0 : index
    %c0_10 = arith.constant 0 : index
    %4 = vector.load %arg4[%c0_7, %c0_8, %c0_9, %c0_10] : memref<1x1x16x8xf32, #tpu.memory_space<vmem>>, vector<1x1x16x8xf32>
    %5 = vector.shape_cast %4 : vector<1x1x16x8xf32> to vector<1x16x8xf32>
    %6 = tpu.concatenate %1, %3, %5 in 0 : vector<1x16x8xf32>, vector<8x16x8xf32>, vector<1x16x8xf32> -> vector<10x16x8xf32>
    %cst = arith.constant 0.000000e+00 : f32
    %7 = vector.broadcast %cst : f32 to vector<10x1x8xf32>
    %8 = vector.extract_strided_slice %6 {offsets = [0, 0, 0], sizes = [10, 15, 8], strides = [1, 1, 1]} : vector<10x16x8xf32> to vector<10x15x8xf32>
    %9 = tpu.concatenate %7, %8 in 1 : vector<10x1x8xf32>, vector<10x15x8xf32> -> vector<10x16x8xf32>
    %10 = vector.extract_strided_slice %6 {offsets = [0, 1, 0], sizes = [10, 15, 8], strides = [1, 1, 1]} : vector<10x16x8xf32> to vector<10x15x8xf32>
    %11 = tpu.concatenate %10, %7 in 1 : vector<10x15x8xf32>, vector<10x1x8xf32> -> vector<10x16x8xf32>
    %12 = tpu.concatenate %9, %6, %11 in 2 : vector<10x16x8xf32>, vector<10x16x8xf32>, vector<10x16x8xf32> -> vector<10x16x24xf32>
    %13 = vector.shape_cast %12 : vector<10x16x24xf32> to vector<160x24xf32>
    %c0_11 = arith.constant 0 : index
    %c0_12 = arith.constant 0 : index
    %14 = vector.load %arg5[%c0_11, %c0_12] : memref<24x8xf32, #tpu.memory_space<vmem>>, vector<24x8xf32>
    %cst_13 = arith.constant dense<0.000000e+00> : vector<160x8xf32>
    %15 = tpu.matmul %13, %14, %cst_13 {dimension_numbers = #tpu.dot_dimension_numbers<[1], [0], [0], [1], [0, 0, 1, 1], [], []>} : vector<160x24xf32>, vector<24x8xf32>, vector<160x8xf32> -> vector<160x8xf32>
    %c0_14 = arith.constant 0 : index
    %c0_15 = arith.constant 0 : index
    %16 = vector.load %arg6[%c0_14, %c0_15] : memref<1x8xf32, #tpu.memory_space<vmem>>, vector<1x8xf32>
    %17 = vector.broadcast %16 : vector<1x8xf32> to vector<160x8xf32>
    %18 = arith.addf %15, %17 : vector<160x8xf32>
    %cst_16 = arith.constant 0.000000e+00 : f32
    %19 = vector.broadcast %cst_16 : f32 to vector<160x8xf32>
    %20 = arith.maximumf %18, %19 : vector<160x8xf32>
    %21 = vector.shape_cast %20 : vector<160x8xf32> to vector<10x16x8xf32>
    %22 = tpu.iota {dimensions = array<i32: 0>} : vector<10x1x1xi32>
    %c0_i32 = arith.constant 0 : i32
    %23 = vector.broadcast %c0_i32 : i32 to vector<10x1x1xi32>
    %24 = arith.cmpi ne, %22, %23 : vector<10x1x1xi32>
    %c0_i32_17 = arith.constant 0 : i32
    %25 = arith.cmpi sgt, %arg1, %c0_i32_17 : i32
    %26 = vector.broadcast %25 : i1 to vector<10x1x1xi1>
    %27 = arith.ori %24, %26 : vector<10x1x1xi1>
    %c9_i32 = arith.constant 9 : i32
    %28 = vector.broadcast %c9_i32 : i32 to vector<10x1x1xi32>
    %29 = arith.cmpi ne, %22, %28 : vector<10x1x1xi32>
    %c1_i32 = arith.constant 1 : i32
    %30 = arith.cmpi slt, %arg1, %c1_i32 : i32
    %31 = vector.broadcast %30 : i1 to vector<10x1x1xi1>
    %32 = arith.ori %29, %31 : vector<10x1x1xi1>
    %33 = arith.andi %27, %32 : vector<10x1x1xi1>
    %cst_18 = arith.constant 0.000000e+00 : f32
    %34 = vector.shape_cast %33 : vector<10x1x1xi1> to vector<10x1x1xi1>
    %35 = vector.broadcast %34 : vector<10x1x1xi1> to vector<10x16x8xi1>
    %36 = vector.broadcast %cst_18 : f32 to vector<10x16x8xf32>
    %37 = arith.select %35, %21, %36 : vector<10x16x8xi1>, vector<10x16x8xf32>
    %38 = vector.extract_strided_slice %37 {offsets = [0, 0, 0], sizes = [8, 16, 8], strides = [1, 1, 1]} : vector<10x16x8xf32> to vector<8x16x8xf32>
    %39 = vector.extract_strided_slice %37 {offsets = [1, 0, 0], sizes = [8, 16, 8], strides = [1, 1, 1]} : vector<10x16x8xf32> to vector<8x16x8xf32>
    %40 = vector.extract_strided_slice %37 {offsets = [2, 0, 0], sizes = [8, 16, 8], strides = [1, 1, 1]} : vector<10x16x8xf32> to vector<8x16x8xf32>
    %41 = tpu.concatenate %38, %39, %40 in 2 : vector<8x16x8xf32>, vector<8x16x8xf32>, vector<8x16x8xf32> -> vector<8x16x24xf32>
    %42 = vector.shape_cast %41 : vector<8x16x24xf32> to vector<128x24xf32>
    %c0_19 = arith.constant 0 : index
    %c0_20 = arith.constant 0 : index
    %43 = vector.load %arg7[%c0_19, %c0_20] : memref<24x8xf32, #tpu.memory_space<vmem>>, vector<24x8xf32>
    %cst_21 = arith.constant dense<0.000000e+00> : vector<128x8xf32>
    %44 = tpu.matmul %42, %43, %cst_21 {dimension_numbers = #tpu.dot_dimension_numbers<[1], [0], [0], [1], [0, 0, 1, 1], [], []>} : vector<128x24xf32>, vector<24x8xf32>, vector<128x8xf32> -> vector<128x8xf32>
    %c0_22 = arith.constant 0 : index
    %c0_23 = arith.constant 0 : index
    %45 = vector.load %arg8[%c0_22, %c0_23] : memref<1x8xf32, #tpu.memory_space<vmem>>, vector<1x8xf32>
    %46 = vector.broadcast %45 : vector<1x8xf32> to vector<128x8xf32>
    %47 = arith.addf %44, %46 : vector<128x8xf32>
    %cst_24 = arith.constant 0.000000e+00 : f32
    %48 = vector.broadcast %cst_24 : f32 to vector<128x8xf32>
    %49 = arith.maximumf %47, %48 : vector<128x8xf32>
    %c0_25 = arith.constant 0 : index
    %c0_26 = arith.constant 0 : index
    %c0_27 = arith.constant 0 : index
    %c0_28 = arith.constant 0 : index
    %50 = vector.load %arg3[%c0_25, %c0_26, %c0_27, %c0_28] : memref<1x8x16x8xf32, #tpu.memory_space<vmem>>, vector<1x8x16x8xf32>
    %51 = vector.shape_cast %50 : vector<1x8x16x8xf32> to vector<8x16x8xf32>
    %52 = vector.shape_cast %51 : vector<8x16x8xf32> to vector<128x8xf32>
    %53 = arith.addf %49, %52 : vector<128x8xf32>
    %54 = vector.shape_cast %53 : vector<128x8xf32> to vector<8x16x8xf32>
    %c0_29 = arith.constant 0 : index
    %c0_30 = arith.constant 0 : index
    %c0_31 = arith.constant 0 : index
    %c0_32 = arith.constant 0 : index
    %55 = vector.load %arg9[%c0_29, %c0_30, %c0_31, %c0_32] : memref<1x8x16x8xf32, #tpu.memory_space<vmem>>, vector<1x8x16x8xf32>
    %56 = vector.shape_cast %55 : vector<1x8x16x8xf32> to vector<8x16x8xf32>
    %57 = vector.shape_cast %54 : vector<8x16x8xf32> to vector<1x8x16x8xf32>
    tpu.vector_store %arg9[%c0_29, %c0_30, %c0_31, %c0_32], %57 {strides = array<i32>} : memref<1x8x16x8xf32, #tpu.memory_space<vmem>>, vector<1x8x16x8xf32>,
    return
  }
  func.func @transform_0(%arg0: i32, %arg1: i32) -> (i32, i32, i32, i32) {
    %c8_i32 = arith.constant 8 : i32
    %0 = arith.muli %arg1, %c8_i32 : i32
    %c1_i32 = arith.constant 1 : i32
    %1 = arith.subi %0, %c1_i32 : i32
    %c0_i32 = arith.constant 0 : i32
    %2 = arith.maxsi %1, %c0_i32 : i32
    %c0_i32_0 = arith.constant 0 : i32
    %c0_i32_1 = arith.constant 0 : i32
    %c0_i32_2 = arith.constant 0 : i32
    return %arg0, %2, %c0_i32_0, %c0_i32_1 : i32, i32, i32, i32
  }
  func.func @transform_1(%arg0: i32, %arg1: i32) -> (i32, i32, i32, i32) {
    %c0_i32 = arith.constant 0 : i32
    %c0_i32_0 = arith.constant 0 : i32
    %c0_i32_1 = arith.constant 0 : i32
    return %arg0, %arg1, %c0_i32, %c0_i32_0 : i32, i32, i32, i32
  }
  func.func @transform_2(%arg0: i32, %arg1: i32) -> (i32, i32, i32, i32) {
    %c8_i32 = arith.constant 8 : i32
    %0 = arith.muli %arg1, %c8_i32 : i32
    %c8_i32_0 = arith.constant 8 : i32
    %1 = arith.addi %0, %c8_i32_0 : i32
    %c15_i32 = arith.constant 15 : i32
    %2 = arith.minsi %1, %c15_i32 : i32
    %c0_i32 = arith.constant 0 : i32
    %c0_i32_1 = arith.constant 0 : i32
    %c0_i32_2 = arith.constant 0 : i32
    return %arg0, %2, %c0_i32, %c0_i32_1 : i32, i32, i32, i32
  }
  func.func @transform_3(%arg0: i32, %arg1: i32) -> (i32, i32) {
    %c0_i32 = arith.constant 0 : i32
    %c0_i32_0 = arith.constant 0 : i32
    %c0_i32_1 = arith.constant 0 : i32
    return %c0_i32, %c0_i32_0 : i32, i32
  }
  func.func @transform_4(%arg0: i32, %arg1: i32) -> (i32, i32) {
    %c0_i32 = arith.constant 0 : i32
    %c0_i32_0 = arith.constant 0 : i32
    %c0_i32_1 = arith.constant 0 : i32
    return %c0_i32, %c0_i32_0 : i32, i32
  }
  func.func @transform_5(%arg0: i32, %arg1: i32) -> (i32, i32) {
    %c0_i32 = arith.constant 0 : i32
    %c0_i32_0 = arith.constant 0 : i32
    %c0_i32_1 = arith.constant 0 : i32
    return %c0_i32, %c0_i32_0 : i32, i32
  }
  func.func @transform_6(%arg0: i32, %arg1: i32) -> (i32, i32) {
    %c0_i32 = arith.constant 0 : i32
    %c0_i32_0 = arith.constant 0 : i32
    %c0_i32_1 = arith.constant 0 : i32
    return %c0_i32, %c0_i32_0 : i32, i32
  }
  func.func @transform_7(%arg0: i32, %arg1: i32) -> (i32, i32, i32, i32) {
    %c0_i32 = arith.constant 0 : i32
    %c0_i32_0 = arith.constant 0 : i32
    %c0_i32_1 = arith.constant 0 : i32
    return %arg0, %arg1, %c0_i32, %c0_i32_0 : i32, i32, i32, i32
  }
}

</mosaic_0001>

<llo_original>
// kernel: tpu_custom_call.1
$region0: #{tpu_custom_call.1}
  #allocation0 [shape = 'u32[]', space=smem, size = 0x4, offset = 0x4, fixed_abs, tag = 'smem constant byte address 0x4 - core index']
  #allocation1 [shape = 'u32[144,128]{1,0:T(1,128)}', space=vmem, size = 0x12000, scoped, tag = 'internal scratch']
  %s0 = inlined_call_operand.vmem [shape: f32[2,16,16,8], index: 0, kind: input, shape index: {}]
  %s1 = inlined_call_operand.vmem [shape: f32[2,16,16,8], index: 1, kind: input, shape index: {}]
  %s2 = inlined_call_operand.vmem [shape: f32[2,16,16,8], index: 2, kind: input, shape index: {}]
  %s3 = inlined_call_operand.vmem [shape: f32[24,8], index: 3, kind: input, shape index: {}]
  %s4 = inlined_call_operand.vmem [shape: f32[1,8], index: 4, kind: input, shape index: {}]
  %s5 = inlined_call_operand.vmem [shape: f32[24,8], index: 5, kind: input, shape index: {}]
  %s6 = inlined_call_operand.vmem [shape: f32[1,8], index: 6, kind: input, shape index: {}]
  %s7 = inlined_call_operand.vmem [shape: f32[2,16,16,8], index: 7, kind: output, shape index: {}]
  %s8 = sld [smem:[#allocation0]]
  $region61: #{tpu_custom_call.1} parent=0
    _
  %s10 = ssub.s32 1, %s8
  %s11 = scalar_select 0, %s10, %s8
  loop: start=0, step=1, limit=6
  $region2: #{tpu_custom_call.1} parent=0 // loop_pre_header
    _
  $region3: #{tpu_custom_call.1} parent=0 // loop_header
    %s13 = sphi 0, %s17
    %p14 = scmp.ge.s32.totalorder %s13, 6
    %s20 = sphi 0, %s32
    %s21 = sphi 0, %s28
    %s22 = sphi 0, %s20
    %s23 = sphi 0, %s21
    %s24 = sphi 0, %s22
    %s25 = sphi 0, %s23
    %s45 = sphi 0, %s47
    %s48 = sphi 0, %s45
    %s49 = sphi 0, %s48
    %s65 = sphi 0, %s49
    %s73 = sphi 0, %s75
    %s76 = sphi 0, %s73
    %s77 = sphi 0, %s76
    %s93 = sphi 0, %s77
    %s109 = sphi 0, %s111
    %s112 = sphi 0, %s109
    %s113 = sphi 0, %s112
    %s129 = sphi 0, %s113
    %s133 = sphi 0, %s133
    %s135 = sphi 0, %s133
    %s136 = sphi 0, %s135
    %s150 = sphi 0, %s136
    %s154 = sphi 0, %s154
    %s156 = sphi 0, %s154
    %s157 = sphi 0, %s156
    %s171 = sphi 0, %s157
    %s175 = sphi 0, %s175
    %s177 = sphi 0, %s175
    %s178 = sphi 0, %s177
    %s192 = sphi 0, %s178
    %s196 = sphi 0, %s196
    %s198 = sphi 0, %s196
    %s199 = sphi 0, %s198
    %s213 = sphi 0, %s199
    %s221 = sphi 0, %s223
    %s224 = sphi 0, %s221
    %s225 = sphi 0, %s224
    %s241 = sphi 0, %s225
  $region4: #{tpu_custom_call.1} parent=0 // loop_header_branch
    %16 = sbr.rel (%p14) target = $region8
  $region5: #{tpu_custom_call.1} parent=0 // loop_body
    %s18 = ssub.s32 %s13, 1
    %s19 = ssub.s32 %s13, 2
    %s26 = sadd.s32 1, %s21
    %p27 = scmp.ge.s32.totalorder %s26, 2
    %s28 = scalar_select %p27, 0, %s26
    %s29 = sadd.s32 1, %s20
    %s30 = scalar_select %p27, %s29, %s20
    %p31 = scmp.ge.s32.totalorder %s30, 2
    %s32 = scalar_select %p31, 0, %s30
    %s33 = smul.u32 %s21, 8
    %s34 = ssub.s32 %s33, 1
    %p35 = scmp.gt.s32.totalorder %s34, 0
    %s36 = scalar_select %p35, %s34, 0
    %s37 = smul.u32 %s28, 8
    %s38 = ssub.s32 %s37, 1
    %p39 = scmp.gt.s32.totalorder %s38, 0
    %s40 = scalar_select %p39, %s38, 0
    %s41 = ssub.s32 %s20, %s32
    %s42 = ssub.s32 %s36, %s40
    %s43 = sor.u32 %s41, %s42
    %p44 = scmp.eq.s32.totalorder %s43, 0
    %s46 = sadd.s32 %s45, 1
    %s47 = scalar_select %p44, %s45, %s46
    %p50 = pneg %p44
    %p51 = scmp.eq.s32.totalorder %s13, 3
    %p52 = por %p50, %p51
    %p53 = scmp.ne.s32.totalorder %s45, %s48
    %p54 = scmp.eq.s32.totalorder %s13, 0
    %p55 = por %p53, %p54
    %p56 = scmp.ne.s32.totalorder %s45, %s48
    %p57 = scmp.eq.s32.totalorder %s18, 3
    %p58 = por %p56, %p57
    %p59 = scmp.ne.s32.totalorder %s48, %s49
    %p60 = scmp.eq.s32.totalorder %s18, 0
    %p61 = por %p59, %p60
    %p62 = scmp.ne.s32.totalorder %s48, %s49
    %p63 = scmp.eq.s32.totalorder %s19, 3
    %p64 = por %p62, %p63
    %p66 = scmp.ne.s32.totalorder %s49, %s65
    %p67 = scmp.eq.s32.totalorder %s19, 0
    %p68 = por %p66, %p67
    %s69 = ssub.s32 %s20, %s32
    %s70 = ssub.s32 %s21, %s28
    %s71 = sor.u32 %s69, %s70
    %p72 = scmp.eq.s32.totalorder %s71, 0
    %s74 = sadd.s32 %s73, 1
    %s75 = scalar_select %p72, %s73, %s74
    %p78 = pneg %p72
    %p79 = scmp.eq.s32.totalorder %s13, 3
    %p80 = por %p78, %p79
    %p81 = scmp.ne.s32.totalorder %s73, %s76
    %p82 = scmp.eq.s32.totalorder %s13, 0
    %p83 = por %p81, %p82
    %p84 = scmp.ne.s32.totalorder %s73, %s76
    %p85 = scmp.eq.s32.totalorder %s18, 3
    %p86 = por %p84, %p85
    %p87 = scmp.ne.s32.totalorder %s76, %s77
    %p88 = scmp.eq.s32.totalorder %s18, 0
    %p89 = por %p87, %p88
    %p90 = scmp.ne.s32.totalorder %s76, %s77
    %p91 = scmp.eq.s32.totalorder %s19, 3
    %p92 = por %p90, %p91
    %p94 = scmp.ne.s32.totalorder %s77, %s93
    %p95 = scmp.eq.s32.totalorder %s19, 0
    %p96 = por %p94, %p95
    %s97 = smul.u32 %s21, 8
    %s98 = sadd.s32 %s97, 8
    %p99 = scmp.lt.s32.totalorder %s98, 15
    %s100 = scalar_select %p99, %s98, 15
    %s101 = smul.u32 %s28, 8
    %s102 = sadd.s32 %s101, 8
    %p103 = scmp.lt.s32.totalorder %s102, 15
    %s104 = scalar_select %p103, %s102, 15
    %s105 = ssub.s32 %s20, %s32
    %s106 = ssub.s32 %s100, %s104
    %s107 = sor.u32 %s105, %s106
    %p108 = scmp.eq.s32.totalorder %s107, 0
    %s110 = sadd.s32 %s109, 1
    %s111 = scalar_select %p108, %s109, %s110
    %p114 = pneg %p108
    %p115 = scmp.eq.s32.totalorder %s13, 3
    %p116 = por %p114, %p115
    %p117 = scmp.ne.s32.totalorder %s109, %s112
    %p118 = scmp.eq.s32.totalorder %s13, 0
    %p119 = por %p117, %p118
    %p120 = scmp.ne.s32.totalorder %s109, %s112
    %p121 = scmp.eq.s32.totalorder %s18, 3
    %p122 = por %p120, %p121
    %p123 = scmp.ne.s32.totalorder %s112, %s113
    %p124 = scmp.eq.s32.totalorder %s18, 0
    %p125 = por %p123, %p124
    %p126 = scmp.ne.s32.totalorder %s112, %s113
    %p127 = scmp.eq.s32.totalorder %s19, 3
    %p128 = por %p126, %p127
    %p130 = scmp.ne.s32.totalorder %s113, %s129
    %p131 = scmp.eq.s32.totalorder %s19, 0
    %p132 = por %p130, %p131
    %s134 = sadd.s32 %s133, 1
    %p137 = scmp.eq.s32.totalorder %s13, 3
    %p138 = scmp.ne.s32.totalorder %s133, %s135
    %p139 = scmp.eq.s32.totalorder %s13, 0
    %p140 = por %p138, %p139
    %p141 = scmp.ne.s32.totalorder %s133, %s135
    %p142 = scmp.eq.s32.totalorder %s18, 3
    %p143 = por %p141, %p142
    %p144 = scmp.ne.s32.totalorder %s135, %s136
    %p145 = scmp.eq.s32.totalorder %s18, 0
    %p146 = por %p144, %p145
    %p147 = scmp.ne.s32.totalorder %s135, %s136
    %p148 = scmp.eq.s32.totalorder %s19, 3
    %p149 = por %p147, %p148
    %p151 = scmp.ne.s32.totalorder %s136, %s150
    %p152 = scmp.eq.s32.totalorder %s19, 0
    %p153 = por %p151, %p152
    %s155 = sadd.s32 %s154, 1
    %p158 = scmp.eq.s32.totalorder %s13, 3
    %p159 = scmp.ne.s32.totalorder %s154, %s156
    %p160 = scmp.eq.s32.totalorder %s13, 0
    %p161 = por %p159, %p160
    %p162 = scmp.ne.s32.totalorder %s154, %s156
    %p163 = scmp.eq.s32.totalorder %s18, 3
    %p164 = por %p162, %p163
    %p165 = scmp.ne.s32.totalorder %s156, %s157
    %p166 = scmp.eq.s32.totalorder %s18, 0
    %p167 = por %p165, %p166
    %p168 = scmp.ne.s32.totalorder %s156, %s157
    %p169 = scmp.eq.s32.totalorder %s19, 3
    %p170 = por %p168, %p169
    %p172 = scmp.ne.s32.totalorder %s157, %s171
    %p173 = scmp.eq.s32.totalorder %s19, 0
    %p174 = por %p172, %p173
    %s176 = sadd.s32 %s175, 1
    %p179 = scmp.eq.s32.totalorder %s13, 3
    %p180 = scmp.ne.s32.totalorder %s175, %s177
    %p181 = scmp.eq.s32.totalorder %s13, 0
    %p182 = por %p180, %p181
    %p183 = scmp.ne.s32.totalorder %s175, %s177
    %p184 = scmp.eq.s32.totalorder %s18, 3
    %p185 = por %p183, %p184
    %p186 = scmp.ne.s32.totalorder %s177, %s178
    %p187 = scmp.eq.s32.totalorder %s18, 0
    %p188 = por %p186, %p187
    %p189 = scmp.ne.s32.totalorder %s177, %s178
    %p190 = scmp.eq.s32.totalorder %s19, 3
    %p191 = por %p189, %p190
    %p193 = scmp.ne.s32.totalorder %s178, %s192
    %p194 = scmp.eq.s32.totalorder %s19, 0
    %p195 = por %p193, %p194
    %s197 = sadd.s32 %s196, 1
    %p200 = scmp.eq.s32.totalorder %s13, 3
    %p201 = scmp.ne.s32.totalorder %s196, %s198
    %p202 = scmp.eq.s32.totalorder %s13, 0
    %p203 = por %p201, %p202
    %p204 = scmp.ne.s32.totalorder %s196, %s198
    %p205 = scmp.eq.s32.totalorder %s18, 3
    %p206 = por %p204, %p205
    %p207 = scmp.ne.s32.totalorder %s198, %s199
    %p208 = scmp.eq.s32.totalorder %s18, 0
    %p209 = por %p207, %p208
    %p210 = scmp.ne.s32.totalorder %s198, %s199
    %p211 = scmp.eq.s32.totalorder %s19, 3
    %p212 = por %p210, %p211
    %p214 = scmp.ne.s32.totalorder %s199, %s213
    %p215 = scmp.eq.s32.totalorder %s19, 0
    %p216 = por %p214, %p215
    %s217 = ssub.s32 %s20, %s32
    %s218 = ssub.s32 %s21, %s28
    %s219 = sor.u32 %s217, %s218
    %p220 = scmp.eq.s32.totalorder %s219, 0
    %s222 = sadd.s32 %s221, 1
    %s223 = scalar_select %p220, %s221, %s222
    %p226 = pneg %p220
    %p227 = scmp.eq.s32.totalorder %s13, 3
    %p228 = por %p226, %p227
    %p229 = scmp.ne.s32.totalorder %s221, %s224
    %p230 = scmp.eq.s32.totalorder %s13, 0
    %p231 = por %p229, %p230
    %p232 = scmp.ne.s32.totalorder %s221, %s224
    %p233 = scmp.eq.s32.totalorder %s18, 3
    %p234 = por %p232, %p233
    %p235 = scmp.ne.s32.totalorder %s224, %s225
    %p236 = scmp.eq.s32.totalorder %s18, 0
    %p237 = por %p235, %p236
    %p238 = scmp.ne.s32.totalorder %s224, %s225
    %p239 = scmp.eq.s32.totalorder %s19, 3
    %p240 = por %p238, %p239
    %p242 = scmp.ne.s32.totalorder %s225, %s241
    %p243 = scmp.eq.s32.totalorder %s19, 0
    %p244 = por %p242, %p243
    %p245 = scmp.le.s32.totalorder 1, %s13
    %p246 = scmp.lt.s32.totalorder %s13, 5
    %p247 = pnand %p245, %p246
    %p248 = pneg %p247
    // Predicated region
    $region9: #{tpu_custom_call.1} parent=5 // pred_check
      _
    $region10: #{tpu_custom_call.1} parent=5 // pred_check_branch
      %250 = sbr.rel (%p247) target = $region12
    $region11: #{tpu_custom_call.1} parent=5 // pred_region
      %s251 = ssub.s32 %s13, 1
      // Predicated region
      $region13: #{tpu_custom_call.1} parent=11 // pred_check
        %p252 = pneg %p146
      $region14: #{tpu_custom_call.1} parent=11 // pred_check_branch
        %254 = sbr.rel (%p252) target = $region16
      $region15: #{tpu_custom_call.1} parent=11 // pred_region
        _
      $region16: #{tpu_custom_call.1} parent=11 // pred_fallthru
        _
      // Predicated region
      $region17: #{tpu_custom_call.1} parent=11 // pred_check
        %p255 = pneg %p167
      $region18: #{tpu_custom_call.1} parent=11 // pred_check_branch
        %257 = sbr.rel (%p255) target = $region20
      $region19: #{tpu_custom_call.1} parent=11 // pred_region
        _
      $region20: #{tpu_custom_call.1} parent=11 // pred_fallthru
        _
      // Predicated region
      $region21: #{tpu_custom_call.1} parent=11 // pred_check
        %p258 = pneg %p188
      $region22: #{tpu_custom_call.1} parent=11 // pred_check_branch
        %260 = sbr.rel (%p258) target = $region24
      $region23: #{tpu_custom_call.1} parent=11 // pred_region
        _
      $region24: #{tpu_custom_call.1} parent=11 // pred_fallthru
        _
      // Predicated region
      $region25: #{tpu_custom_call.1} parent=11 // pred_check
        %p261 = pneg %p209
      $region26: #{tpu_custom_call.1} parent=11 // pred_check_branch
        %263 = sbr.rel (%p261) target = $region28
      $region27: #{tpu_custom_call.1} parent=11 // pred_region
        _
      $region28: #{tpu_custom_call.1} parent=11 // pred_fallthru
        _
    $region12: #{tpu_custom_call.1} parent=5 // pred_fallthru
      _
    %p264 = scmp.lt.s32.totalorder %s13, 4
    // Predicated region
    $region29: #{tpu_custom_call.1} parent=5 // pred_check
      %p265 = pneg %p264
    $region30: #{tpu_custom_call.1} parent=5 // pred_check_branch
      %267 = sbr.rel (%p265) target = $region32
    $region31: #{tpu_custom_call.1} parent=5 // pred_region
      // Predicated region
      $region33: #{tpu_custom_call.1} parent=31 // pred_check
        %p268 = pneg %p55
      $region34: #{tpu_custom_call.1} parent=31 // pred_check_branch
        %270 = sbr.rel (%p268) target = $region36
      $region35: #{tpu_custom_call.1} parent=31 // pred_region
        %s271 = smul.u32 %s21, 8
        %s272 = ssub.s32 %s271, 1
        %p273 = scmp.gt.s32.totalorder %s272, 0
        %s274 = scalar_select %p273, %s272, 0
        %p275 = scmp.lt.s32.totalorder %s20, 1
        %s276 = scalar_select %p275, %s20, 1
        %p277 = scmp.lt.s32.totalorder %s274, 15
        %s278 = scalar_select %p277, %s274, 15
        %s279 = smul.addr %s278, 2
        %s280 = smul.addr %s276, 32
        %s281 = sadd.s32 %s279, %s280
        %s282 = smul.addr %s281, 8
        %s283 = scalar_lea.vmem %s0, %s282
        %s284 = smul.u32 %s21, 8
        %s285 = ssub.s32 %s284, 1
        %p286 = scmp.gt.s32.totalorder %s285, 0
        %s287 = scalar_select %p286, %s285, 0
      $region36: #{tpu_custom_call.1} parent=31 // pred_fallthru
        _
      // Predicated region
      $region37: #{tpu_custom_call.1} parent=31 // pred_check
        %p288 = pneg %p83
      $region38: #{tpu_custom_call.1} parent=31 // pred_check_branch
        %290 = sbr.rel (%p288) target = $region40
      $region39: #{tpu_custom_call.1} parent=31 // pred_region
        %s291 = smul.u32 8, %s21
        %p292 = scmp.lt.s32.totalorder %s20, 1
        %s293 = scalar_select %p292, %s20, 1
        %p294 = scmp.lt.s32.totalorder %s291, 15
        %s295 = scalar_select %p294, %s291, 15
        %s296 = smul.addr %s295, 2
        %s297 = smul.addr %s293, 32
        %s298 = sadd.s32 %s296, %s297
        %s299 = smul.addr %s298, 8
        %s300 = scalar_lea.vmem %s1, %s299
        %s301 = smul.u32 8, %s21
      $region40: #{tpu_custom_call.1} parent=31 // pred_fallthru
        _
      // Predicated region
      $region41: #{tpu_custom_call.1} parent=31 // pred_check
        %p302 = pneg %p119
      $region42: #{tpu_custom_call.1} parent=31 // pred_check_branch
        %304 = sbr.rel (%p302) target = $region44
      $region43: #{tpu_custom_call.1} parent=31 // pred_region
        %s305 = smul.u32 %s21, 8
        %s306 = sadd.s32 %s305, 8
        %p307 = scmp.lt.s32.totalorder %s306, 15
        %s308 = scalar_select %p307, %s306, 15
        %p309 = scmp.lt.s32.totalorder %s20, 1
        %s310 = scalar_select %p309, %s20, 1
        %p311 = scmp.lt.s32.totalorder %s308, 15
        %s312 = scalar_select %p311, %s308, 15
        %s313 = smul.addr %s312, 2
        %s314 = smul.addr %s310, 32
        %s315 = sadd.s32 %s313, %s314
        %s316 = smul.addr %s315, 8
        %s317 = scalar_lea.vmem %s2, %s316
        %s318 = smul.u32 %s21, 8
        %s319 = sadd.s32 %s318, 8
        %p320 = scmp.lt.s32.totalorder %s319, 15
        %s321 = scalar_select %p320, %s319, 15
      $region44: #{tpu_custom_call.1} parent=31 // pred_fallthru
        _
    $region32: #{tpu_custom_call.1} parent=5 // pred_fallthru
      _
    %p322 = scmp.le.s32.totalorder 1, %s13
    %p323 = scmp.lt.s32.totalorder %s13, 5
    %p324 = pnand %p322, %p323
    %p325 = pneg %p324
    // Predicated region
    $region45: #{tpu_custom_call.1} parent=5 // pred_check
      _
    $region46: #{tpu_custom_call.1} parent=5 // pred_check_branch
      %327 = sbr.rel (%p324) target = $region48
    $region47: #{tpu_custom_call.1} parent=5 // pred_region
      %s328 = ssub.s32 %s13, 1
      %s329 = smul.u32 %s23, 8
      %s330 = ssub.s32 %s329, 1
      %p331 = scmp.gt.s32.totalorder %s330, 0
      %s332 = scalar_select %p331, %s330, 0
      %p333 = scmp.lt.s32.totalorder %s22, 1
      %s334 = scalar_select %p333, %s22, 1
      %p335 = scmp.lt.s32.totalorder %s332, 15
      %s336 = scalar_select %p335, %s332, 15
      %s337 = smul.addr %s336, 2
      %s338 = smul.addr %s334, 32
      %s339 = sadd.s32 %s337, %s338
      %s340 = smul.addr %s339, 8
      %s341 = scalar_lea.vmem %s0, %s340
      %p342 = pneg %p61
      %p343 = pneg %p58
      %s344 = smul.u32 8, %s23
      %p345 = scmp.lt.s32.totalorder %s22, 1
      %s346 = scalar_select %p345, %s22, 1
      %p347 = scmp.lt.s32.totalorder %s344, 15
      %s348 = scalar_select %p347, %s344, 15
      %s349 = smul.addr %s348, 2
      %s350 = smul.addr %s346, 32
      %s351 = sadd.s32 %s349, %s350
      %s352 = smul.addr %s351, 8
      %s353 = scalar_lea.vmem %s1, %s352
      %p354 = pneg %p89
      %p355 = pneg %p86
      %s356 = smul.u32 %s23, 8
      %s357 = sadd.s32 %s356, 8
      %p358 = scmp.lt.s32.totalorder %s357, 15
      %s359 = scalar_select %p358, %s357, 15
      %p360 = scmp.lt.s32.totalorder %s22, 1
      %s361 = scalar_select %p360, %s22, 1
      %p362 = scmp.lt.s32.totalorder %s359, 15
      %s363 = scalar_select %p362, %s359, 15
      %s364 = smul.addr %s363, 2
      %s365 = smul.addr %s361, 32
      %s366 = sadd.s32 %s364, %s365
      %s367 = smul.addr %s366, 8
      %s368 = scalar_lea.vmem %s2, %s367
      %p369 = pneg %p125
      %p370 = pneg %p122
      %p371 = pneg %p146
      %p372 = pneg %p143
      %p373 = pneg %p167
      %p374 = pneg %p164
      %p375 = pneg %p188
      %p376 = pneg %p185
      %p377 = pneg %p209
      %p378 = pneg %p206
      %p379 = pneg %p237
      %p380 = pneg %p234
      %s381 = smul.u32 8, %s23
      %p382 = scmp.lt.s32.totalorder %s22, 1
      %s383 = scalar_select %p382, %s22, 1
      %p384 = scmp.lt.s32.totalorder %s381, 15
      %s385 = scalar_select %p384, %s381, 15
      %s386 = smul.addr %s385, 2
      %s387 = smul.addr %s383, 32
      %s388 = sadd.s32 %s386, %s387
      %s389 = smul.addr %s388, 8
      %s390 = scalar_lea.vmem %s7, %s389
      %s391 = smul.u32 %s23, 8
      %s392 = ssub.s32 %s391, 1
      %p393 = scmp.gt.s32.totalorder %s392, 0
      %s394 = scalar_select %p393, %s392, 0
      %p395 = scmp.lt.s32.totalorder %s22, 1
      %s396 = scalar_select %p395, %s22, 1
      %p397 = scmp.lt.s32.totalorder %s394, 15
      %s398 = scalar_select %p397, %s394, 15
      %s399 = smul.addr %s398, 2
      %s400 = smul.addr %s396, 32
      %s401 = sadd.s32 %s399, %s400
      %s402 = smul.addr %s401, 8
      %s403 = scalar_lea.vmem %s0, %s402
      %s404 = smul.u32 %s23, 8
      %s405 = ssub.s32 %s404, 1
      %p406 = scmp.gt.s32.totalorder %s405, 0
      %s407 = scalar_select %p406, %s405, 0
      %s408 = smul.u32 8, %s23
      %p409 = scmp.lt.s32.totalorder %s22, 1
      %s410 = scalar_select %p409, %s22, 1
      %p411 = scmp.lt.s32.totalorder %s408, 15
      %s412 = scalar_select %p411, %s408, 15
      %s413 = smul.addr %s412, 2
      %s414 = smul.addr %s410, 32
      %s415 = sadd.s32 %s413, %s414
      %s416 = smul.addr %s415, 8
      %s417 = scalar_lea.vmem %s1, %s416
      %s418 = smul.u32 8, %s23
      %s419 = smul.u32 %s23, 8
      %s420 = sadd.s32 %s419, 8
      %p421 = scmp.lt.s32.totalorder %s420, 15
      %s422 = scalar_select %p421, %s420, 15
      %p423 = scmp.lt.s32.totalorder %s22, 1
      %s424 = scalar_select %p423, %s22, 1
      %p425 = scmp.lt.s32.totalorder %s422, 15
      %s426 = scalar_select %p425, %s422, 15
      %s427 = smul.addr %s426, 2
      %s428 = smul.addr %s424, 32
      %s429 = sadd.s32 %s427, %s428
      %s430 = smul.addr %s429, 8
      %s431 = scalar_lea.vmem %s2, %s430
      %s432 = smul.u32 %s23, 8
      %s433 = sadd.s32 %s432, 8
      %p434 = scmp.lt.s32.totalorder %s433, 15
      %s435 = scalar_select %p434, %s433, 15
      %s436 = smul.u32 8, %s23
      %p437 = scmp.lt.s32.totalorder %s22, 1
      %s438 = scalar_select %p437, %s22, 1
      %p439 = scmp.lt.s32.totalorder %s436, 15
      %s440 = scalar_select %p439, %s436, 15
      %s441 = smul.addr %s440, 2
      %s442 = smul.addr %s438, 32
      %s443 = sadd.s32 %s441, %s442
      %s444 = smul.addr %s443, 8
      %s445 = scalar_lea.vmem %s7, %s444
      %s446 = smul.u32 8, %s23
      %v447 = vld [vmem:[%s403] sm:$0xff]
      %v448 = vld [vmem:[%s403 + $0x8] sm:$0xff]
      %v449 = vld [vmem:[%s417] sm:$0xff]
      %v450 = vld [vmem:[%s417 + $0x8] sm:$0xff]
      %v451 = vld [vmem:[%s417 + $0x10] sm:$0xff]
      %v452 = vld [vmem:[%s417 + $0x18] sm:$0xff]
      %v453 = vld [vmem:[%s417 + $0x20] sm:$0xff]
      %v454 = vld [vmem:[%s417 + $0x28] sm:$0xff]
      %v455 = vld [vmem:[%s417 + $0x30] sm:$0xff]
      %v456 = vld [vmem:[%s417 + $0x38] sm:$0xff]
      %v457 = vld [vmem:[%s417 + $0x40] sm:$0xff]
      %v458 = vld [vmem:[%s417 + $0x48] sm:$0xff]
      %v459 = vld [vmem:[%s417 + $0x50] sm:$0xff]
      %v460 = vld [vmem:[%s417 + $0x58] sm:$0xff]
      %v461 = vld [vmem:[%s417 + $0x60] sm:$0xff]
      %v462 = vld [vmem:[%s417 + $0x68] sm:$0xff]
      %v463 = vld [vmem:[%s417 + $0x70] sm:$0xff]
      %v464 = vld [vmem:[%s417 + $0x78] sm:$0xff]
      %v465 = vld [vmem:[%s431] sm:$0xff]
      %v466 = vld [vmem:[%s431 + $0x8] sm:$0xff]
      %vm487 = vcmask 1040384
      %v488 = vrot.slane %v447, 7
      %v489 = vrot.slane %v448, 7
      %v490 = vsel %vm487, %v488, %v489
      %v491 = vrot.slane %v449, 7
      %v492 = vrot.slane %v450, 7
      %v493 = vsel %vm487, %v491, %v492
      %v494 = vrot.slane %v451, 7
      %v495 = vrot.slane %v452, 7
      %v496 = vsel %vm487, %v494, %v495
      %v497 = vrot.slane %v453, 7
      %v498 = vrot.slane %v454, 7
      %v499 = vsel %vm487, %v497, %v498
      %v500 = vrot.slane %v455, 7
      %v501 = vrot.slane %v456, 7
      %v502 = vsel %vm487, %v500, %v501
      %v503 = vrot.slane %v457, 7
      %v504 = vrot.slane %v458, 7
      %v505 = vsel %vm487, %v503, %v504
      %v506 = vrot.slane %v459, 7
      %v507 = vrot.slane %v460, 7
      %v508 = vsel %vm487, %v506, %v507
      %v509 = vrot.slane %v461, 7
      %v510 = vrot.slane %v462, 7
      %v511 = vsel %vm487, %v509, %v510
      %v512 = vrot.slane %v463, 7
      %v513 = vrot.slane %v464, 7
      %v514 = vsel %vm487, %v512, %v513
      %v515 = vrot.slane %v465, 7
      %v516 = vrot.slane %v466, 7
      %v517 = vsel %vm487, %v515, %v516
      %v538 = vsel %vm487, 0.0, %v488
      %v539 = vsel %vm487, 0.0, %v491
      %v540 = vsel %vm487, 0.0, %v494
      %v541 = vsel %vm487, 0.0, %v497
      %v542 = vsel %vm487, 0.0, %v500
      %v543 = vsel %vm487, 0.0, %v503
      %v544 = vsel %vm487, 0.0, %v506
      %v545 = vsel %vm487, 0.0, %v509
      %v546 = vsel %vm487, 0.0, %v512
      %v547 = vsel %vm487, 0.0, %v515
      %vm548 = vcmask 1046528
      %v549 = vrot.slane %v447, 1
      %v550 = vrot.slane %v448, 1
      %v551 = vsel %vm548, %v549, %v550
      %v552 = vrot.slane %v449, 1
      %v553 = vrot.slane %v450, 1
      %v554 = vsel %vm548, %v552, %v553
      %v555 = vrot.slane %v451, 1
      %v556 = vrot.slane %v452, 1
      %v557 = vsel %vm548, %v555, %v556
      %v558 = vrot.slane %v453, 1
      %v559 = vrot.slane %v454, 1
      %v560 = vsel %vm548, %v558, %v559
      %v561 = vrot.slane %v455, 1
      %v562 = vrot.slane %v456, 1
      %v563 = vsel %vm548, %v561, %v562
      %v564 = vrot.slane %v457, 1
      %v565 = vrot.slane %v458, 1
      %v566 = vsel %vm548, %v564, %v565
      %v567 = vrot.slane %v459, 1
      %v568 = vrot.slane %v460, 1
      %v569 = vsel %vm548, %v567, %v568
      %v570 = vrot.slane %v461, 1
      %v571 = vrot.slane %v462, 1
      %v572 = vsel %vm548, %v570, %v571
      %v573 = vrot.slane %v463, 1
      %v574 = vrot.slane %v464, 1
      %v575 = vsel %vm548, %v573, %v574
      %v576 = vrot.slane %v465, 1
      %v577 = vrot.slane %v466, 1
      %v578 = vsel %vm548, %v576, %v577
      %v589 = vsel %vm548, %v550, 0.0
      %v590 = vsel %vm548, %v553, 0.0
      %v591 = vsel %vm548, %v556, 0.0
      %v592 = vsel %vm548, %v559, 0.0
      %v593 = vsel %vm548, %v562, 0.0
      %v594 = vsel %vm548, %v565, 0.0
      %v595 = vsel %vm548, %v568, 0.0
      %v596 = vsel %vm548, %v571, 0.0
      %v597 = vsel %vm548, %v574, 0.0
      %v598 = vsel %vm548, %v577, 0.0
      %599 = vrot.lane.b32.xlu0 %v447, 8
      %v600 = vpop.permute.xlu0 %599
      %601 = vrot.lane.b32.xlu0 %v448, 8
      %v602 = vpop.permute.xlu0 %601
      %603 = vrot.lane.b32.xlu0 %v449, 8
      %v604 = vpop.permute.xlu0 %603
      %605 = vrot.lane.b32.xlu0 %v450, 8
      %v606 = vpop.permute.xlu0 %605
      %607 = vrot.lane.b32.xlu0 %v451, 8
      %v608 = vpop.permute.xlu0 %607
      %609 = vrot.lane.b32.xlu0 %v452, 8
      %v610 = vpop.permute.xlu0 %609
      %611 = vrot.lane.b32.xlu0 %v453, 8
      %v612 = vpop.permute.xlu0 %611
      %613 = vrot.lane.b32.xlu0 %v454, 8
      %v614 = vpop.permute.xlu0 %613
      %615 = vrot.lane.b32.xlu0 %v455, 8
      %v616 = vpop.permute.xlu0 %615
      %617 = vrot.lane.b32.xlu0 %v456, 8
      %v618 = vpop.permute.xlu0 %617
      %619 = vrot.lane.b32.xlu0 %v457, 8
      %v620 = vpop.permute.xlu0 %619
      %621 = vrot.lane.b32.xlu0 %v458, 8
      %v622 = vpop.permute.xlu0 %621
      %623 = vrot.lane.b32.xlu0 %v459, 8
      %v624 = vpop.permute.xlu0 %623
      %625 = vrot.lane.b32.xlu0 %v460, 8
      %v626 = vpop.permute.xlu0 %625
      %627 = vrot.lane.b32.xlu0 %v461, 8
      %v628 = vpop.permute.xlu0 %627
      %629 = vrot.lane.b32.xlu0 %v462, 8
      %v630 = vpop.permute.xlu0 %629
      %631 = vrot.lane.b32.xlu0 %v463, 8
      %v632 = vpop.permute.xlu0 %631
      %633 = vrot.lane.b32.xlu0 %v464, 8
      %v634 = vpop.permute.xlu0 %633
      %635 = vrot.lane.b32.xlu0 %v465, 8
      %v636 = vpop.permute.xlu0 %635
      %637 = vrot.lane.b32.xlu0 %v466, 8
      %v638 = vpop.permute.xlu0 %637
      %669 = vrot.lane.b32.xlu0 %v551, 16
      %v670 = vpop.permute.xlu0 %669
      %671 = vrot.lane.b32.xlu0 %v589, 16
      %v672 = vpop.permute.xlu0 %671
      %673 = vrot.lane.b32.xlu0 %v554, 16
      %v674 = vpop.permute.xlu0 %673
      %675 = vrot.lane.b32.xlu0 %v590, 16
      %v676 = vpop.permute.xlu0 %675
      %677 = vrot.lane.b32.xlu0 %v557, 16
      %v678 = vpop.permute.xlu0 %677
      %679 = vrot.lane.b32.xlu0 %v591, 16
      %v680 = vpop.permute.xlu0 %679
      %681 = vrot.lane.b32.xlu0 %v560, 16
      %v682 = vpop.permute.xlu0 %681
      %683 = vrot.lane.b32.xlu0 %v592, 16
      %v684 = vpop.permute.xlu0 %683
      %685 = vrot.lane.b32.xlu0 %v563, 16
      %v686 = vpop.permute.xlu0 %685
      %687 = vrot.lane.b32.xlu0 %v593, 16
      %v688 = vpop.permute.xlu0 %687
      %689 = vrot.lane.b32.xlu0 %v566, 16
      %v690 = vpop.permute.xlu0 %689
      %691 = vrot.lane.b32.xlu0 %v594, 16
      %v692 = vpop.permute.xlu0 %691
      %693 = vrot.lane.b32.xlu0 %v569, 16
      %v694 = vpop.permute.xlu0 %693
      %695 = vrot.lane.b32.xlu0 %v595, 16
      %v696 = vpop.permute.xlu0 %695
      %697 = vrot.lane.b32.xlu0 %v572, 16
      %v698 = vpop.permute.xlu0 %697
      %699 = vrot.lane.b32.xlu0 %v596, 16
      %v700 = vpop.permute.xlu0 %699
      %701 = vrot.lane.b32.xlu0 %v575, 16
      %v702 = vpop.permute.xlu0 %701
      %703 = vrot.lane.b32.xlu0 %v597, 16
      %v704 = vpop.permute.xlu0 %703
      %705 = vrot.lane.b32.xlu0 %v578, 16
      %v706 = vpop.permute.xlu0 %705
      %707 = vrot.lane.b32.xlu0 %v598, 16
      %v708 = vpop.permute.xlu0 %707
      %vm729 = vcmask 64512
      %v730 = vsel %vm729, %v538, %v600
      %v731 = vsel %vm729, %v490, %v602
      %v732 = vsel %vm729, %v539, %v604
      %v733 = vsel %vm729, %v493, %v606
      %v734 = vsel %vm729, %v540, %v608
      %v735 = vsel %vm729, %v496, %v610
      %v736 = vsel %vm729, %v541, %v612
      %v737 = vsel %vm729, %v499, %v614
      %v738 = vsel %vm729, %v542, %v616
      %v739 = vsel %vm729, %v502, %v618
      %v740 = vsel %vm729, %v543, %v620
      %v741 = vsel %vm729, %v505, %v622
      %v742 = vsel %vm729, %v544, %v624
      %v743 = vsel %vm729, %v508, %v626
      %v744 = vsel %vm729, %v545, %v628
      %v745 = vsel %vm729, %v511, %v630
      %v746 = vsel %vm729, %v546, %v632
      %v747 = vsel %vm729, %v514, %v634
      %v748 = vsel %vm729, %v547, %v636
      %v749 = vsel %vm729, %v517, %v638
      %vm750 = vcmask 130048
      %v751 = vsel %vm750, %v730, %v670
      %v752 = vsel %vm750, %v731, %v672
      %v753 = vsel %vm750, %v732, %v674
      %v754 = vsel %vm750, %v733, %v676
      %v755 = vsel %vm750, %v734, %v678
      %v756 = vsel %vm750, %v735, %v680
      %v757 = vsel %vm750, %v736, %v682
      %v758 = vsel %vm750, %v737, %v684
      %v759 = vsel %vm750, %v738, %v686
      %v760 = vsel %vm750, %v739, %v688
      %v761 = vsel %vm750, %v740, %v690
      %v762 = vsel %vm750, %v741, %v692
      %v763 = vsel %vm750, %v742, %v694
      %v764 = vsel %vm750, %v743, %v696
      %v765 = vsel %vm750, %v744, %v698
      %v766 = vsel %vm750, %v745, %v700
      %v767 = vsel %vm750, %v746, %v702
      %v768 = vsel %vm750, %v747, %v704
      %v769 = vsel %vm750, %v748, %v706
      %v770 = vsel %vm750, %v749, %v708
      %v771 = vld [vmem:[%s3] sm:$0xff]
      %v772 = vld [vmem:[%s3 + $0x8] sm:$0xff]
      %v773 = vld [vmem:[%s3 + $0x10] sm:$0xff]
      %v774 = vld [vmem:[%s4] sm:$0x1]
      %v776 = vlaneseq
      %v777 = vshrl.u32 %v776, 7
      %v778 = vsub.s32 0, %v777
      %v779 = vrot.slane %v774, %v778
      %vm781 = vcmask 195584
      %v783 = vsel %vm781, %v751, 0
      %v786 = vsel %vm781, %v752, 0
      %v789 = vsel %vm781, %v753, 0
      %v792 = vsel %vm781, %v754, 0
      %v795 = vsel %vm781, %v755, 0
      %v798 = vsel %vm781, %v756, 0
      %v801 = vsel %vm781, %v757, 0
      %v804 = vsel %vm781, %v758, 0
      %v807 = vsel %vm781, %v759, 0
      %v810 = vsel %vm781, %v760, 0
      %v813 = vsel %vm781, %v761, 0
      %v816 = vsel %vm781, %v762, 0
      %v819 = vsel %vm781, %v763, 0
      %v822 = vsel %vm781, %v764, 0
      %v825 = vsel %vm781, %v765, 0
      %v828 = vsel %vm781, %v766, 0
      %v831 = vsel %vm781, %v767, 0
      %v834 = vsel %vm781, %v768, 0
      %v837 = vsel %vm781, %v769, 0
      %v840 = vsel %vm781, %v770, 0
      %842 = vmatprep.subr.mxu0 0.0
      %843 = vmatpush1.msra.mxu0 %v771
      %844 = vmatprep.subr.mxu0 0.0
      %845 = vmatpush1.msra.mxu0 %v772
      %846 = vmatprep.subr.mxu0 0.0
      %847 = vmatpush1.msra.mxu0 %v773
      %848 = vmatprep.subr.mxu0 0.0
      %849 = vmatpush1.msra.mxu0 0.0
      %850 = vmatprep.subr.mxu0 0.0
      %851 = vmatpush1.msra.mxu0 0.0
      %852 = vmatprep.subr.mxu0 0.0
      %853 = vmatpush1.msra.mxu0 0.0
      %854 = vmatprep.subr.mxu0 0.0
      %855 = vmatpush1.msra.mxu0 0.0
      %856 = vmatprep.subr.mxu0 0.0
      %857 = vmatpush1.msra.mxu0 0.0
      %858 = vmatprep.subr.mxu0 0.0
      %859 = vmatpush1.msra.mxu0 0.0
      %860 = vmatprep.subr.mxu0 0.0
      %861 = vmatpush1.msra.mxu0 0.0
      %862 = vmatprep.subr.mxu0 0.0
      %863 = vmatpush1.msra.mxu0 0.0
      %864 = vmatprep.subr.mxu0 0.0
      %865 = vmatpush1.msra.mxu0 0.0
      %866 = vmatprep.subr.mxu0 0.0
      %867 = vmatpush1.msra.mxu0 0.0
      %868 = vmatprep.subr.mxu0 0.0
      %869 = vmatpush1.msra.mxu0 0.0
      %870 = vmatprep.subr.mxu0 0.0
      %871 = vmatpush1.msra.mxu0 0.0
      %872 = vmatprep.subr.mxu0 0.0
      %873 = vmatpush1.msra.mxu0 0.0
      %874 = vmatprep.subr.mxu0 0.0
      %875 = vmatpush1.msra.mxu0 0.0
      %876 = vmatprep.subr.mxu0 0.0
      %877 = vmatpush1.msra.mxu0 0.0
      %878 = vmatprep.subr.mxu0 0.0
      %879 = vmatpush1.msra.mxu0 0.0
      %880 = vmatprep.subr.mxu0 0.0
      %881 = vmatpush1.msra.mxu0 0.0
      %882 = vmatprep.subr.mxu0 0.0
      %883 = vmatpush1.msra.mxu0 0.0
      %884 = vmatprep.subr.mxu0 0.0
      %885 = vmatpush1.msra.mxu0 0.0
      %886 = vmatprep.subr.mxu0 0.0
      %887 = vmatpush1.msra.mxu0 0.0
      %888 = vmatprep.subr.mxu0 0.0
      %889 = vmatpush1.msra.mxu0 0.0
      %890 = vmatprep.subr.mxu0 0.0
      %891 = vmatpush1.msra.mxu0 0.0
      %892 = vmatprep.subr.mxu0 0.0
      %893 = vmatpush1.msra.mxu0 0.0
      %894 = vmatprep.subr.mxu0 0.0
      %895 = vmatpush1.msra.mxu0 0.0
      %896 = vmatprep.subr.mxu0 0.0
      %897 = vmatpush1.msra.mxu0 0.0
      %898 = vmatprep.subr.mxu0 0.0
      %899 = vmatpush1.msra.mxu0 0.0
      %900 = vmatprep.subr.mxu0 0.0
      %901 = vmatpush1.msra.mxu0 0.0
      %902 = vmatprep.subr.mxu0 0.0
      %903 = vmatpush1.msra.mxu0 0.0
      %904 = vmatprep.subr.mxu0 0.0
      %905 = vmatpush1.msra.mxu0 0.0
      %906 = vmatprep.mubr.f32.mxu0 0.0
      %907 = vmatmul.mubr.f32.gmra.mrb[0].mxu0 %v783
      %v908 = vpop.f32.mrb[0].mxu0
      %v909 = vadd.f32 %v779, %v908
      %v910 = vpop.f32.mrb[0].mxu0
      %911 = vmatprep.mubr.f32.mxu0 0.0
      %912 = vmatmul.mubr.f32.gmra.mrb[0].mxu0 %v786
      %v913 = vpop.f32.mrb[0].mxu0
      %v914 = vadd.f32 %v779, %v913
      %v915 = vpop.f32.mrb[0].mxu0
      %916 = vmatprep.mubr.f32.mxu0 0.0
      %917 = vmatmul.mubr.f32.gmra.mrb[0].mxu0 %v789
      %v918 = vpop.f32.mrb[0].mxu0
      %v919 = vadd.f32 %v779, %v918
      %v920 = vpop.f32.mrb[0].mxu0
      %921 = vmatprep.mubr.f32.mxu0 0.0
      %922 = vmatmul.mubr.f32.gmra.mrb[0].mxu0 %v792
      %v923 = vpop.f32.mrb[0].mxu0
      %v924 = vadd.f32 %v779, %v923
      %v925 = vpop.f32.mrb[0].mxu0
      %926 = vmatprep.mubr.f32.mxu0 0.0
      %927 = vmatmul.mubr.f32.gmra.mrb[0].mxu0 %v795
      %v928 = vpop.f32.mrb[0].mxu0
      %v929 = vadd.f32 %v779, %v928
      %v930 = vpop.f32.mrb[0].mxu0
      %931 = vmatprep.mubr.f32.mxu0 0.0
      %932 = vmatmul.mubr.f32.gmra.mrb[0].mxu0 %v798
      %v933 = vpop.f32.mrb[0].mxu0
      %v934 = vadd.f32 %v779, %v933
      %v935 = vpop.f32.mrb[0].mxu0
      %936 = vmatprep.mubr.f32.mxu0 0.0
      %937 = vmatmul.mubr.f32.gmra.mrb[0].mxu0 %v801
      %v938 = vpop.f32.mrb[0].mxu0
      %v939 = vadd.f32 %v779, %v938
      %v940 = vpop.f32.mrb[0].mxu0
      %941 = vmatprep.mubr.f32.mxu0 0.0
      %942 = vmatmul.mubr.f32.gmra.mrb[0].mxu0 %v804
      %v943 = vpop.f32.mrb[0].mxu0
      %v944 = vadd.f32 %v779, %v943
      %v945 = vpop.f32.mrb[0].mxu0
      %946 = vmatprep.mubr.f32.mxu0 0.0
      %947 = vmatmul.mubr.f32.gmra.mrb[0].mxu0 %v807
      %v948 = vpop.f32.mrb[0].mxu0
      %v949 = vadd.f32 %v779, %v948
      %v950 = vpop.f32.mrb[0].mxu0
      %951 = vmatprep.mubr.f32.mxu0 0.0
      %952 = vmatmul.mubr.f32.gmra.mrb[0].mxu0 %v810
      %v953 = vpop.f32.mrb[0].mxu0
      %v954 = vadd.f32 %v779, %v953
      %v955 = vpop.f32.mrb[0].mxu0
      %956 = vmatprep.mubr.f32.mxu0 0.0
      %957 = vmatmul.mubr.f32.gmra.mrb[0].mxu0 %v813
      %v958 = vpop.f32.mrb[0].mxu0
      %v959 = vadd.f32 %v779, %v958
      %v960 = vpop.f32.mrb[0].mxu0
      %961 = vmatprep.mubr.f32.mxu0 0.0
      %962 = vmatmul.mubr.f32.gmra.mrb[0].mxu0 %v816
      %v963 = vpop.f32.mrb[0].mxu0
      %v964 = vadd.f32 %v779, %v963
      %v965 = vpop.f32.mrb[0].mxu0
      %966 = vmatprep.mubr.f32.mxu0 0.0
      %967 = vmatmul.mubr.f32.gmra.mrb[0].mxu0 %v819
      %v968 = vpop.f32.mrb[0].mxu0
      %v969 = vadd.f32 %v779, %v968
      %v970 = vpop.f32.mrb[0].mxu0
      %971 = vmatprep.mubr.f32.mxu0 0.0
      %972 = vmatmul.mubr.f32.gmra.mrb[0].mxu0 %v822
      %v973 = vpop.f32.mrb[0].mxu0
      %v974 = vadd.f32 %v779, %v973
      %v975 = vpop.f32.mrb[0].mxu0
      %976 = vmatprep.mubr.f32.mxu0 0.0
      %977 = vmatmul.mubr.f32.gmra.mrb[0].mxu0 %v825
      %v978 = vpop.f32.mrb[0].mxu0
      %v979 = vadd.f32 %v779, %v978
      %v980 = vpop.f32.mrb[0].mxu0
      %981 = vmatprep.mubr.f32.mxu0 0.0
      %982 = vmatmul.mubr.f32.gmra.mrb[0].mxu0 %v828
      %v983 = vpop.f32.mrb[0].mxu0
      %v984 = vadd.f32 %v779, %v983
      %v985 = vpop.f32.mrb[0].mxu0
      %986 = vmatprep.mubr.f32.mxu0 0.0
      %987 = vmatmul.mubr.f32.gmra.mrb[0].mxu0 %v831
      %v988 = vpop.f32.mrb[0].mxu0
      %v989 = vadd.f32 %v779, %v988
      %v990 = vpop.f32.mrb[0].mxu0
      %991 = vmatprep.mubr.f32.mxu0 0.0
      %992 = vmatmul.mubr.f32.gmra.mrb[0].mxu0 %v834
      %v993 = vpop.f32.mrb[0].mxu0
      %v994 = vadd.f32 %v779, %v993
      %v995 = vpop.f32.mrb[0].mxu0
      %996 = vmatprep.mubr.f32.mxu0 0.0
      %997 = vmatmul.mubr.f32.gmra.mrb[0].mxu0 %v837
      %v998 = vpop.f32.mrb[0].mxu0
      %v999 = vadd.f32 %v779, %v998
      %v1000 = vpop.f32.mrb[0].mxu0
      %1001 = vmatprep.mubr.f32.mxu0 0.0
      %1002 = vmatmul.mubr.f32.gmra.mrb[0].mxu0 %v840
      %v1003 = vpop.f32.mrb[0].mxu0
      %v1004 = vadd.f32 %v779, %v1003
      %v1005 = vpop.f32.mrb[0].mxu0
      %1006 = vdwg.mxu0
      %v1007 = vmax.f32 %v909, 0.0
      %v1008 = vmax.f32 %v914, 0.0
      %v1009 = vmax.f32 %v919, 0.0
      %v1010 = vmax.f32 %v924, 0.0
      %v1011 = vmax.f32 %v929, 0.0
      %v1012 = vmax.f32 %v934, 0.0
      %v1013 = vmax.f32 %v939, 0.0
      %v1014 = vmax.f32 %v944, 0.0
      %v1015 = vmax.f32 %v949, 0.0
      %v1016 = vmax.f32 %v954, 0.0
      %v1017 = vmax.f32 %v959, 0.0
      %v1018 = vmax.f32 %v964, 0.0
      %v1019 = vmax.f32 %v969, 0.0
      %v1020 = vmax.f32 %v974, 0.0
      %v1021 = vmax.f32 %v979, 0.0
      %v1022 = vmax.f32 %v984, 0.0
      %v1023 = vmax.f32 %v989, 0.0
      %v1024 = vmax.f32 %v994, 0.0
      %v1025 = vmax.f32 %v999, 0.0
      %v1026 = vmax.f32 %v1004, 0.0
      %p1027 = scmp.gt.s32.totalorder %s23, 0
      %s1028 = scalar_select %p1027, 1, 0
      %v1029 = vstv %s1028
      %vm1030 = vcmp.eq.s32.totalorder %v1029, 1
      %p1031 = scmp.lt.s32.totalorder %s23, 1
      %s1032 = scalar_select %p1031, 1, 0
      %v1033 = vstv %s1032
      %vm1034 = vcmp.eq.s32.totalorder %v1033, 1
      %v1035 = vsel %vm1030, 1, 0
      %v1036 = vsel %vm1034, 1, 0
      %vm1037 = vcmp.eq.s32.totalorder %v1035, 1
      %vm1038 = vcmp.eq.s32.totalorder %v1036, 1
      %v1039 = vsel %vm1037, %v1007, 0.0
      %v1040 = vsel %vm1037, %v1008, 0.0
      %v1041 = vsel 1, %v1009, 0.0
      %v1042 = vsel 1, %v1010, 0.0
      %v1043 = vsel 1, %v1011, 0.0
      %v1044 = vsel 1, %v1012, 0.0
      %v1045 = vsel 1, %v1013, 0.0
      %v1046 = vsel 1, %v1014, 0.0
      %v1047 = vsel 1, %v1015, 0.0
      %v1048 = vsel 1, %v1016, 0.0
      %v1049 = vsel 1, %v1017, 0.0
      %v1050 = vsel 1, %v1018, 0.0
      %v1051 = vsel 1, %v1019, 0.0
      %v1052 = vsel 1, %v1020, 0.0
      %v1053 = vsel 1, %v1021, 0.0
      %v1054 = vsel 1, %v1022, 0.0
      %v1055 = vsel 1, %v1023, 0.0
      %v1056 = vsel 1, %v1024, 0.0
      %v1057 = vsel %vm1038, %v1025, 0.0
      %v1058 = vsel %vm1038, %v1026, 0.0
      %1075 = vrot.lane.b32.xlu0 %v1041, 8
      %v1076 = vpop.permute.xlu0 %1075
      %1077 = vrot.lane.b32.xlu0 %v1042, 8
      %v1078 = vpop.permute.xlu0 %1077
      %1079 = vrot.lane.b32.xlu0 %v1043, 8
      %v1080 = vpop.permute.xlu0 %1079
      %1081 = vrot.lane.b32.xlu0 %v1044, 8
      %v1082 = vpop.permute.xlu0 %1081
      %1083 = vrot.lane.b32.xlu0 %v1045, 8
      %v1084 = vpop.permute.xlu0 %1083
      %1085 = vrot.lane.b32.xlu0 %v1046, 8
      %v1086 = vpop.permute.xlu0 %1085
      %1087 = vrot.lane.b32.xlu0 %v1047, 8
      %v1088 = vpop.permute.xlu0 %1087
      %1089 = vrot.lane.b32.xlu0 %v1048, 8
      %v1090 = vpop.permute.xlu0 %1089
      %1091 = vrot.lane.b32.xlu0 %v1049, 8
      %v1092 = vpop.permute.xlu0 %1091
      %1093 = vrot.lane.b32.xlu0 %v1050, 8
      %v1094 = vpop.permute.xlu0 %1093
      %1095 = vrot.lane.b32.xlu0 %v1051, 8
      %v1096 = vpop.permute.xlu0 %1095
      %1097 = vrot.lane.b32.xlu0 %v1052, 8
      %v1098 = vpop.permute.xlu0 %1097
      %1099 = vrot.lane.b32.xlu0 %v1053, 8
      %v1100 = vpop.permute.xlu0 %1099
      %1101 = vrot.lane.b32.xlu0 %v1054, 8
      %v1102 = vpop.permute.xlu0 %1101
      %1103 = vrot.lane.b32.xlu0 %v1055, 8
      %v1104 = vpop.permute.xlu0 %1103
      %1105 = vrot.lane.b32.xlu0 %v1056, 8
      %v1106 = vpop.permute.xlu0 %1105
      %1125 = vrot.lane.b32.xlu0 %v1043, 16
      %v1126 = vpop.permute.xlu0 %1125
      %1127 = vrot.lane.b32.xlu0 %v1044, 16
      %v1128 = vpop.permute.xlu0 %1127
      %1129 = vrot.lane.b32.xlu0 %v1045, 16
      %v1130 = vpop.permute.xlu0 %1129
      %1131 = vrot.lane.b32.xlu0 %v1046, 16
      %v1132 = vpop.permute.xlu0 %1131
      %1133 = vrot.lane.b32.xlu0 %v1047, 16
      %v1134 = vpop.permute.xlu0 %1133
      %1135 = vrot.lane.b32.xlu0 %v1048, 16
      %v1136 = vpop.permute.xlu0 %1135
      %1137 = vrot.lane.b32.xlu0 %v1049, 16
      %v1138 = vpop.permute.xlu0 %1137
      %1139 = vrot.lane.b32.xlu0 %v1050, 16
      %v1140 = vpop.permute.xlu0 %1139
      %1141 = vrot.lane.b32.xlu0 %v1051, 16
      %v1142 = vpop.permute.xlu0 %1141
      %1143 = vrot.lane.b32.xlu0 %v1052, 16
      %v1144 = vpop.permute.xlu0 %1143
      %1145 = vrot.lane.b32.xlu0 %v1053, 16
      %v1146 = vpop.permute.xlu0 %1145
      %1147 = vrot.lane.b32.xlu0 %v1054, 16
      %v1148 = vpop.permute.xlu0 %1147
      %1149 = vrot.lane.b32.xlu0 %v1055, 16
      %v1150 = vpop.permute.xlu0 %1149
      %1151 = vrot.lane.b32.xlu0 %v1056, 16
      %v1152 = vpop.permute.xlu0 %1151
      %1153 = vrot.lane.b32.xlu0 %v1057, 16
      %v1154 = vpop.permute.xlu0 %1153
      %1155 = vrot.lane.b32.xlu0 %v1058, 16
      %v1156 = vpop.permute.xlu0 %1155
      %v1173 = vsel %vm729, %v1039, %v1076
      %v1174 = vsel %vm729, %v1040, %v1078
      %v1175 = vsel %vm729, %v1041, %v1080
      %v1176 = vsel %vm729, %v1042, %v1082
      %v1177 = vsel %vm729, %v1043, %v1084
      %v1178 = vsel %vm729, %v1044, %v1086
      %v1179 = vsel %vm729, %v1045, %v1088
      %v1180 = vsel %vm729, %v1046, %v1090
      %v1181 = vsel %vm729, %v1047, %v1092
      %v1182 = vsel %vm729, %v1048, %v1094
      %v1183 = vsel %vm729, %v1049, %v1096
      %v1184 = vsel %vm729, %v1050, %v1098
      %v1185 = vsel %vm729, %v1051, %v1100
      %v1186 = vsel %vm729, %v1052, %v1102
      %v1187 = vsel %vm729, %v1053, %v1104
      %v1188 = vsel %vm729, %v1054, %v1106
      %v1189 = vsel %vm750, %v1173, %v1126
      %v1190 = vsel %vm750, %v1174, %v1128
      %v1191 = vsel %vm750, %v1175, %v1130
      %v1192 = vsel %vm750, %v1176, %v1132
      %v1193 = vsel %vm750, %v1177, %v1134
      %v1194 = vsel %vm750, %v1178, %v1136
      %v1195 = vsel %vm750, %v1179, %v1138
      %v1196 = vsel %vm750, %v1180, %v1140
      %v1197 = vsel %vm750, %v1181, %v1142
      %v1198 = vsel %vm750, %v1182, %v1144
      %v1199 = vsel %vm750, %v1183, %v1146
      %v1200 = vsel %vm750, %v1184, %v1148
      %v1201 = vsel %vm750, %v1185, %v1150
      %v1202 = vsel %vm750, %v1186, %v1152
      %v1203 = vsel %vm750, %v1187, %v1154
      %v1204 = vsel %vm750, %v1188, %v1156
      %v1205 = vld [vmem:[%s5] sm:$0xff]
      %v1206 = vld [vmem:[%s5 + $0x8] sm:$0xff]
      %v1207 = vld [vmem:[%s5 + $0x10] sm:$0xff]
      %v1208 = vld [vmem:[%s6] sm:$0x1]
      %v1210 = vlaneseq
      %v1211 = vshrl.u32 %v1210, 7
      %v1212 = vsub.s32 0, %v1211
      %v1213 = vrot.slane %v1208, %v1212
      %v1216 = vsel %vm781, %v1189, 0
      %v1219 = vsel %vm781, %v1190, 0
      %v1222 = vsel %vm781, %v1191, 0
      %v1225 = vsel %vm781, %v1192, 0
      %v1228 = vsel %vm781, %v1193, 0
      %v1231 = vsel %vm781, %v1194, 0
      %v1234 = vsel %vm781, %v1195, 0
      %v1237 = vsel %vm781, %v1196, 0
      %v1240 = vsel %vm781, %v1197, 0
      %v1243 = vsel %vm781, %v1198, 0
      %v1246 = vsel %vm781, %v1199, 0
      %v1249 = vsel %vm781, %v1200, 0
      %v1252 = vsel %vm781, %v1201, 0
      %v1255 = vsel %vm781, %v1202, 0
      %v1258 = vsel %vm781, %v1203, 0
      %v1261 = vsel %vm781, %v1204, 0
      %1263 = vmatprep.subr.mxu0 0.0
      %1264 = vmatpush1.msra.mxu0 %v1205
      %1265 = vmatprep.subr.mxu0 0.0
      %1266 = vmatpush1.msra.mxu0 %v1206
      %1267 = vmatprep.subr.mxu0 0.0
      %1268 = vmatpush1.msra.mxu0 %v1207
      %1269 = vmatprep.subr.mxu0 0.0
      %1270 = vmatpush1.msra.mxu0 0.0
      %1271 = vmatprep.subr.mxu0 0.0
      %1272 = vmatpush1.msra.mxu0 0.0
      %1273 = vmatprep.subr.mxu0 0.0
      %1274 = vmatpush1.msra.mxu0 0.0
      %1275 = vmatprep.subr.mxu0 0.0
      %1276 = vmatpush1.msra.mxu0 0.0
      %1277 = vmatprep.subr.mxu0 0.0
      %1278 = vmatpush1.msra.mxu0 0.0
      %1279 = vmatprep.subr.mxu0 0.0
      %1280 = vmatpush1.msra.mxu0 0.0
      %1281 = vmatprep.subr.mxu0 0.0
      %1282 = vmatpush1.msra.mxu0 0.0
      %1283 = vmatprep.subr.mxu0 0.0
      %1284 = vmatpush1.msra.mxu0 0.0
      %1285 = vmatprep.subr.mxu0 0.0
      %1286 = vmatpush1.msra.mxu0 0.0
      %1287 = vmatprep.subr.mxu0 0.0
      %1288 = vmatpush1.msra.mxu0 0.0
      %1289 = vmatprep.subr.mxu0 0.0
      %1290 = vmatpush1.msra.mxu0 0.0
      %1291 = vmatprep.subr.mxu0 0.0
      %1292 = vmatpush1.msra.mxu0 0.0
      %1293 = vmatprep.subr.mxu0 0.0
      %1294 = vmatpush1.msra.mxu0 0.0
      %1295 = vmatprep.subr.mxu0 0.0
      %1296 = vmatpush1.msra.mxu0 0.0
      %1297 = vmatprep.subr.mxu0 0.0
      %1298 = vmatpush1.msra.mxu0 0.0
      %1299 = vmatprep.subr.mxu0 0.0
      %1300 = vmatpush1.msra.mxu0 0.0
      %1301 = vmatprep.subr.mxu0 0.0
      %1302 = vmatpush1.msra.mxu0 0.0
      %1303 = vmatprep.subr.mxu0 0.0
      %1304 = vmatpush1.msra.mxu0 0.0
      %1305 = vmatprep.subr.mxu0 0.0
      %1306 = vmatpush1.msra.mxu0 0.0
      %1307 = vmatprep.subr.mxu0 0.0
      %1308 = vmatpush1.msra.mxu0 0.0
      %1309 = vmatprep.subr.mxu0 0.0
      %1310 = vmatpush1.msra.mxu0 0.0
      %1311 = vmatprep.subr.mxu0 0.0
      %1312 = vmatpush1.msra.mxu0 0.0
      %1313 = vmatprep.subr.mxu0 0.0
      %1314 = vmatpush1.msra.mxu0 0.0
      %1315 = vmatprep.subr.mxu0 0.0
      %1316 = vmatpush1.msra.mxu0 0.0
      %1317 = vmatprep.subr.mxu0 0.0
      %1318 = vmatpush1.msra.mxu0 0.0
      %1319 = vmatprep.subr.mxu0 0.0
      %1320 = vmatpush1.msra.mxu0 0.0
      %1321 = vmatprep.subr.mxu0 0.0
      %1322 = vmatpush1.msra.mxu0 0.0
      %1323 = vmatprep.subr.mxu0 0.0
      %1324 = vmatpush1.msra.mxu0 0.0
      %1325 = vmatprep.subr.mxu0 0.0
      %1326 = vmatpush1.msra.mxu0 0.0
      %1327 = vmatprep.mubr.f32.mxu0 0.0
      %1328 = vmatmul.mubr.f32.gmra.mrb[0].mxu0 %v1216
      %v1329 = vpop.f32.mrb[0].mxu0
      %v1330 = vadd.f32 %v1213, %v1329
      %v1331 = vpop.f32.mrb[0].mxu0
      %1332 = vmatprep.mubr.f32.mxu0 0.0
      %1333 = vmatmul.mubr.f32.gmra.mrb[0].mxu0 %v1219
      %v1334 = vpop.f32.mrb[0].mxu0
      %v1335 = vadd.f32 %v1213, %v1334
      %v1336 = vpop.f32.mrb[0].mxu0
      %1337 = vmatprep.mubr.f32.mxu0 0.0
      %1338 = vmatmul.mubr.f32.gmra.mrb[0].mxu0 %v1222
      %v1339 = vpop.f32.mrb[0].mxu0
      %v1340 = vadd.f32 %v1213, %v1339
      %v1341 = vpop.f32.mrb[0].mxu0
      %1342 = vmatprep.mubr.f32.mxu0 0.0
      %1343 = vmatmul.mubr.f32.gmra.mrb[0].mxu0 %v1225
      %v1344 = vpop.f32.mrb[0].mxu0
      %v1345 = vadd.f32 %v1213, %v1344
      %v1346 = vpop.f32.mrb[0].mxu0
      %1347 = vmatprep.mubr.f32.mxu0 0.0
      %1348 = vmatmul.mubr.f32.gmra.mrb[0].mxu0 %v1228
      %v1349 = vpop.f32.mrb[0].mxu0
      %v1350 = vadd.f32 %v1213, %v1349
      %v1351 = vpop.f32.mrb[0].mxu0
      %1352 = vmatprep.mubr.f32.mxu0 0.0
      %1353 = vmatmul.mubr.f32.gmra.mrb[0].mxu0 %v1231
      %v1354 = vpop.f32.mrb[0].mxu0
      %v1355 = vadd.f32 %v1213, %v1354
      %v1356 = vpop.f32.mrb[0].mxu0
      %1357 = vmatprep.mubr.f32.mxu0 0.0
      %1358 = vmatmul.mubr.f32.gmra.mrb[0].mxu0 %v1234
      %v1359 = vpop.f32.mrb[0].mxu0
      %v1360 = vadd.f32 %v1213, %v1359
      %v1361 = vpop.f32.mrb[0].mxu0
      %1362 = vmatprep.mubr.f32.mxu0 0.0
      %1363 = vmatmul.mubr.f32.gmra.mrb[0].mxu0 %v1237
      %v1364 = vpop.f32.mrb[0].mxu0
      %v1365 = vadd.f32 %v1213, %v1364
      %v1366 = vpop.f32.mrb[0].mxu0
      %1367 = vmatprep.mubr.f32.mxu0 0.0
      %1368 = vmatmul.mubr.f32.gmra.mrb[0].mxu0 %v1240
      %v1369 = vpop.f32.mrb[0].mxu0
      %v1370 = vadd.f32 %v1213, %v1369
      %v1371 = vpop.f32.mrb[0].mxu0
      %1372 = vmatprep.mubr.f32.mxu0 0.0
      %1373 = vmatmul.mubr.f32.gmra.mrb[0].mxu0 %v1243
      %v1374 = vpop.f32.mrb[0].mxu0
      %v1375 = vadd.f32 %v1213, %v1374
      %v1376 = vpop.f32.mrb[0].mxu0
      %1377 = vmatprep.mubr.f32.mxu0 0.0
      %1378 = vmatmul.mubr.f32.gmra.mrb[0].mxu0 %v1246
      %v1379 = vpop.f32.mrb[0].mxu0
      %v1380 = vadd.f32 %v1213, %v1379
      %v1381 = vpop.f32.mrb[0].mxu0
      %1382 = vmatprep.mubr.f32.mxu0 0.0
      %1383 = vmatmul.mubr.f32.gmra.mrb[0].mxu0 %v1249
      %v1384 = vpop.f32.mrb[0].mxu0
      %v1385 = vadd.f32 %v1213, %v1384
      %v1386 = vpop.f32.mrb[0].mxu0
      %1387 = vmatprep.mubr.f32.mxu0 0.0
      %1388 = vmatmul.mubr.f32.gmra.mrb[0].mxu0 %v1252
      %v1389 = vpop.f32.mrb[0].mxu0
      %v1390 = vadd.f32 %v1213, %v1389
      %v1391 = vpop.f32.mrb[0].mxu0
      %1392 = vmatprep.mubr.f32.mxu0 0.0
      %1393 = vmatmul.mubr.f32.gmra.mrb[0].mxu0 %v1255
      %v1394 = vpop.f32.mrb[0].mxu0
      %v1395 = vadd.f32 %v1213, %v1394
      %v1396 = vpop.f32.mrb[0].mxu0
      %1397 = vmatprep.mubr.f32.mxu0 0.0
      %1398 = vmatmul.mubr.f32.gmra.mrb[0].mxu0 %v1258
      %v1399 = vpop.f32.mrb[0].mxu0
      %v1400 = vadd.f32 %v1213, %v1399
      %v1401 = vpop.f32.mrb[0].mxu0
      %1402 = vmatprep.mubr.f32.mxu0 0.0
      %1403 = vmatmul.mubr.f32.gmra.mrb[0].mxu0 %v1261
      %v1404 = vpop.f32.mrb[0].mxu0
      %v1405 = vadd.f32 %v1213, %v1404
      %v1406 = vpop.f32.mrb[0].mxu0
      %1407 = vdwg.mxu0
      %v1408 = vmax.f32 %v1330, 0.0
      %v1409 = vmax.f32 %v1335, 0.0
      %v1410 = vmax.f32 %v1340, 0.0
      %v1411 = vmax.f32 %v1345, 0.0
      %v1412 = vmax.f32 %v1350, 0.0
      %v1413 = vmax.f32 %v1355, 0.0
      %v1414 = vmax.f32 %v1360, 0.0
      %v1415 = vmax.f32 %v1365, 0.0
      %v1416 = vmax.f32 %v1370, 0.0
      %v1417 = vmax.f32 %v1375, 0.0
      %v1418 = vmax.f32 %v1380, 0.0
      %v1419 = vmax.f32 %v1385, 0.0
      %v1420 = vmax.f32 %v1390, 0.0
      %v1421 = vmax.f32 %v1395, 0.0
      %v1422 = vmax.f32 %v1400, 0.0
      %v1423 = vmax.f32 %v1405, 0.0
      %v1424 = vadd.f32 %v1408, %v449
      %v1425 = vadd.f32 %v1409, %v450
      %v1426 = vadd.f32 %v1410, %v451
      %v1427 = vadd.f32 %v1411, %v452
      %v1428 = vadd.f32 %v1412, %v453
      %v1429 = vadd.f32 %v1413, %v454
      %v1430 = vadd.f32 %v1414, %v455
      %v1431 = vadd.f32 %v1415, %v456
      %v1432 = vadd.f32 %v1416, %v457
      %v1433 = vadd.f32 %v1417, %v458
      %v1434 = vadd.f32 %v1418, %v459
      %v1435 = vadd.f32 %v1419, %v460
      %v1436 = vadd.f32 %v1420, %v461
      %v1437 = vadd.f32 %v1421, %v462
      %v1438 = vadd.f32 %v1422, %v463
      %v1439 = vadd.f32 %v1423, %v464
      %1440 = vst.msk [vmem:[%s445] sm:$0xff] %vm729, %v1424
      %1441 = vst.msk [vmem:[%s445 + $0x8] sm:$0xff] %vm729, %v1425
      %1442 = vst.msk [vmem:[%s445 + $0x10] sm:$0xff] %vm729, %v1426
      %1443 = vst.msk [vmem:[%s445 + $0x18] sm:$0xff] %vm729, %v1427
      %1444 = vst.msk [vmem:[%s445 + $0x20] sm:$0xff] %vm729, %v1428
      %1445 = vst.msk [vmem:[%s445 + $0x28] sm:$0xff] %vm729, %v1429
      %1446 = vst.msk [vmem:[%s445 + $0x30] sm:$0xff] %vm729, %v1430
      %1447 = vst.msk [vmem:[%s445 + $0x38] sm:$0xff] %vm729, %v1431
      %1448 = vst.msk [vmem:[%s445 + $0x40] sm:$0xff] %vm729, %v1432
      %1449 = vst.msk [vmem:[%s445 + $0x48] sm:$0xff] %vm729, %v1433
      %1450 = vst.msk [vmem:[%s445 + $0x50] sm:$0xff] %vm729, %v1434
      %1451 = vst.msk [vmem:[%s445 + $0x58] sm:$0xff] %vm729, %v1435
      %1452 = vst.msk [vmem:[%s445 + $0x60] sm:$0xff] %vm729, %v1436
      %1453 = vst.msk [vmem:[%s445 + $0x68] sm:$0xff] %vm729, %v1437
      %1454 = vst.msk [vmem:[%s445 + $0x70] sm:$0xff] %vm729, %v1438
      %1455 = vst.msk [vmem:[%s445 + $0x78] sm:$0xff] %vm729, %v1439
      %s1456 = smul.u32 8, %s23
      %p1457 = scmp.lt.s32.totalorder %s22, 1
      %s1458 = scalar_select %p1457, %s22, 1
      %p1459 = scmp.lt.s32.totalorder %s1456, 15
      %s1460 = scalar_select %p1459, %s1456, 15
      %s1461 = smul.addr %s1460, 2
      %s1462 = smul.addr %s1458, 32
      %s1463 = sadd.s32 %s1461, %s1462
      %s1464 = smul.addr %s1463, 8
      %s1465 = scalar_lea.vmem %s7, %s1464
      // Predicated region
      $region49: #{tpu_custom_call.1} parent=47 // pred_check
        %p1466 = pneg %p234
      $region50: #{tpu_custom_call.1} parent=47 // pred_check_branch
        %1468 = sbr.rel (%p1466) target = $region52
      $region51: #{tpu_custom_call.1} parent=47 // pred_region
        %s1469 = smul.u32 8, %s23
      $region52: #{tpu_custom_call.1} parent=47 // pred_fallthru
        _
    $region48: #{tpu_custom_call.1} parent=5 // pred_fallthru
      _
    %p1470 = scmp.le.s32.totalorder 2, %s13
    // Predicated region
    $region53: #{tpu_custom_call.1} parent=5 // pred_check
      %p1471 = pneg %p1470
    $region54: #{tpu_custom_call.1} parent=5 // pred_check_branch
      %1473 = sbr.rel (%p1471) target = $region56
    $region55: #{tpu_custom_call.1} parent=5 // pred_region
      %s1474 = ssub.s32 %s13, 2
      // Predicated region
      $region57: #{tpu_custom_call.1} parent=55 // pred_check
        %p1475 = pneg %p240
      $region58: #{tpu_custom_call.1} parent=55 // pred_check_branch
        %1477 = sbr.rel (%p1475) target = $region60
      $region59: #{tpu_custom_call.1} parent=55 // pred_region
        %s1478 = smul.u32 8, %s25
        %p1479 = scmp.lt.s32.totalorder %s24, 1
        %s1480 = scalar_select %p1479, %s24, 1
        %p1481 = scmp.lt.s32.totalorder %s1478, 15
        %s1482 = scalar_select %p1481, %s1478, 15
        %s1483 = smul.addr %s1482, 2
        %s1484 = smul.addr %s1480, 32
        %s1485 = sadd.s32 %s1483, %s1484
        %s1486 = smul.addr %s1485, 8
        %s1487 = scalar_lea.vmem %s7, %s1486
      $region60: #{tpu_custom_call.1} parent=55 // pred_fallthru
        _
    $region56: #{tpu_custom_call.1} parent=5 // pred_fallthru
      _
  $region6: #{tpu_custom_call.1} parent=0 // loop_footer
    %s17 = sadd.s32 1, %s13
  $region7: #{tpu_custom_call.1} parent=0 // loop_footer_branch
    %12 = sbr.rel target = $region3
  $region8: #{tpu_custom_call.1} parent=0 // loop_exit
    _

</llo_original>
